<compile_context>
chip_gen: v7x
topology: tpu7x:2x2x1
jax: 0.10.0
libtpu: 0.0.40
codegen_flags: <defaults>
</compile_context>

<pallas_src>
import functools

import jax
import jax.numpy as jnp
from jax.experimental import pallas as pl
from jax.experimental.pallas import tpu as pltpu

# Matmul operand dtype. float32 keeps PyTorch nn.RNN numerics exactly; set to jnp.bfloat16 on
# v6e/v7x for ~2x MXU throughput and half the resident-weight VMEM (accumulation stays f32).
MM_DTYPE = jnp.float32


def _round_up(n, m):
    return ((n + m - 1) // m) * m


def _rnn_chunk_kernel(x_ref, lens_ref, wih_ref, whh_ref, b_ref,
                      out_ref, hN_ref, xp_ref, h_ref):
    """One chunk of T_CHUNK timesteps of a length-masked tanh RNN.

    Grid: (batch_shards [parallel], time_chunks [arbitrary]).

    Refs (VMEM tiles for grid step (b, c)):
      x_ref   : (B_s, T_c, D)   input chunk, batch-first
      lens_ref: (B_s, 1) int32  per-batch valid lengths (resident)
      wih_ref : (D, D)          W_ih^T (resident)
      whh_ref : (D, D)          W_hh^T (resident)
      b_ref   : (1, D)          b_ih + b_hh (resident)
      out_ref : (B_s, T_c, D)   output chunk (zeros at padded positions)
      hN_ref  : (B_s, D)        resident final-hidden accumulator (written last chunk only)
      xp_ref  : VMEM scratch (B_s*T_c, D) f32 — hoisted input projection for this chunk
      h_ref   : VMEM scratch (B_s, D) f32     — hidden state carried across chunks
    """
    bs, tc, dp = x_ref.shape
    c = pl.program_id(1)

    @pl.when(c == 0)
    def _():
        h_ref[...] = jnp.zeros_like(h_ref)

    # --- parallel part: hoisted input projection, one MXU matmul with M = bs*tc ---
    x2 = x_ref[...].reshape(bs * tc, dp)       # layout-free collapse (tc % 8 == 0, dp % 128 == 0)
    xp_ref[...] = (
        jnp.dot(x2.astype(MM_DTYPE), wih_ref[...].astype(MM_DTYPE),
                preferred_element_type=jnp.float32)
        + b_ref[...]                           # bias broadcast over rows
    )

    # --- serial part: per step only h_prev @ W_hh^T + tanh + masked carry ---
    lens = lens_ref[...]                       # (bs, 1) int32, loaded once
    whh = whh_ref[...].astype(MM_DTYPE)        # hoisted out of the unrolled loop
    h = h_ref[...]                             # (bs, dp) f32
    t0 = c * tc

    for i in range(tc):                        # static unroll over the chunk
        x_t = xp_ref[pl.ds(i, bs, stride=tc), :]          # rows {b*tc + i} -> (bs, dp)
        pre = x_t + jnp.dot(h.astype(MM_DTYPE), whh,
                            preferred_element_type=jnp.float32)
        h_new = jnp.tanh(pre)
        valid = (t0 + i) < lens                            # (bs, 1) bool
        h = jnp.where(valid, h_new, h)                     # carry last valid hidden
        out_ref[:, i, :] = jnp.where(valid, h_new, 0.0).astype(out_ref.dtype)

    h_ref[...] = h

    @pl.when(c == pl.num_programs(1) - 1)
    def _():
        hN_ref[...] = h.astype(hN_ref.dtype)


@functools.partial(jax.jit, static_argnames=("t_chunk",))
def rnn_wrapper_forward(input_sequence, attention_mask, w_ih_t, w_hh_t, bias, *, t_chunk=None):
    """Pallas equivalent of RNNWrapper.forward with rnn = nn.RNN(dim, dim, batch_first via pack).

    Args:
      input_sequence: (bsz, seq_len, dim) float32, batch_first
      attention_mask: (bsz, seq_len)      0/1, right-padded (lengths = mask.sum(1))
      w_ih_t, w_hh_t: (dim, dim)          already transposed so the kernel computes x @ W^T
      bias          : (dim,) or (1, dim)  b_ih + b_hh
    Returns:
      output: (bsz, seq_len, dim)  padded positions are zero vectors
      hidden: (1, bsz, dim)        last valid hidden state (num_layers*dirs = 1)
    """
    bsz, seq_len, dim = input_sequence.shape
    lengths = attention_mask.astype(jnp.int32).sum(axis=1)          # (bsz,)

    # Pad to TPU-friendly tiles: batch -> multiple of 8 (sublanes), dim -> multiple of 128
    # (lanes), seq -> multiple of the time chunk. Pads are no-ops when already aligned;
    # padded batch rows get length 0 and padded feature dims carry exact zeros.
    B_p = _round_up(bsz, 8)
    D_p = _round_up(dim, 128)
    if t_chunk is None:
        t_chunk = min(16, _round_up(seq_len, 8))
    t_chunk = _round_up(t_chunk, 8)
    S_p = _round_up(seq_len, t_chunk)

    f32 = jnp.float32
    x_p = jnp.pad(input_sequence.astype(f32),
                  ((0, B_p - bsz), (0, S_p - seq_len), (0, D_p - dim)))
    lens_p = jnp.pad(lengths, (0, B_p - bsz)).reshape(B_p, 1)
    wih_p = jnp.pad(w_ih_t.astype(f32), ((0, D_p - dim), (0, D_p - dim)))
    whh_p = jnp.pad(w_hh_t.astype(f32), ((0, D_p - dim), (0, D_p - dim)))
    bias_p = jnp.pad(bias.reshape(1, -1).astype(f32), ((0, 0), (0, D_p - dim)))

    # Shard the batch across TensorCores when it is big enough (>= 2 shards of 8 sublanes).
    n_shards = 2 if (B_p % 16 == 0) else 1
    B_s = B_p // n_shards
    n_chunks = S_p // t_chunk

    out_p, hN_p = pl.pallas_call(
        _rnn_chunk_kernel,
        out_shape=(
            jax.ShapeDtypeStruct((B_p, S_p, D_p), f32),
            jax.ShapeDtypeStruct((B_p, D_p), f32),
        ),
        grid_spec=pltpu.PrefetchScalarGridSpec(
            num_scalar_prefetch=0,
            grid=(n_shards, n_chunks),
            in_specs=[
                pl.BlockSpec((B_s, t_chunk, D_p), lambda b, c: (b, c, 0)),   # x chunk
                pl.BlockSpec((B_s, 1),            lambda b, c: (b, 0)),      # lengths (resident)
                pl.BlockSpec((D_p, D_p),          lambda b, c: (0, 0)),      # W_ih^T  (resident)
                pl.BlockSpec((D_p, D_p),          lambda b, c: (0, 0)),      # W_hh^T  (resident)
                pl.BlockSpec((1, D_p),            lambda b, c: (0, 0)),      # bias    (resident)
            ],
            out_specs=[
                pl.BlockSpec((B_s, t_chunk, D_p), lambda b, c: (b, c, 0)),   # per-chunk output
                pl.BlockSpec((B_s, D_p),          lambda b, c: (b, 0)),      # final hidden (resident)
            ],
            scratch_shapes=[
                pltpu.VMEM((B_s * t_chunk, D_p), jnp.float32),   # hoisted input projection
                pltpu.VMEM((B_s, D_p), jnp.float32),             # carried hidden state
            ],
        ),
        compiler_params=pltpu.CompilerParams(
            dimension_semantics=("parallel", "arbitrary"),   # batch shards parallel, time serial
        ),
    )(x_p, lens_p, wih_p, whh_p, bias_p)

    output = out_p[:bsz, :seq_len, :dim]
    hidden = hN_p[:bsz, :dim][None, :, :]
    # NOTE: pad_packed_sequence would trim to max(lengths); we keep the static seq_len
    # (== pad_packed_sequence(..., total_length=seq_len)); extra positions are zeros.
    return output, hidden


def _reference_forward(x, mask, w_ih_t, w_hh_t, bias):
    """Pure-JAX reference (scan) for correctness check."""
    bsz, seq_len, dim = x.shape
    m = mask.astype(jnp.float32)
    b = bias.reshape(1, -1)

    def step(h_prev, inputs):
        x_t, m_t = inputs                                    # (B, D), (B,)
        h_new = jnp.tanh(x_t @ w_ih_t + h_prev @ w_hh_t + b)
        m_c = m_t[:, None]
        h_carry = m_c * h_new + (1.0 - m_c) * h_prev
        return h_carry, m_c * h_new

    h0 = jnp.zeros((bsz, dim), jnp.float32)
    h_last, outs = jax.lax.scan(step, h0,
                                (jnp.transpose(x, (1, 0, 2)), jnp.transpose(m, (1, 0))))
    return jnp.transpose(outs, (1, 0, 2)), h_last[None]


if __name__ == "__main__":
    bsz, seq_len, dim = 2, 8, 32

    key = jax.random.PRNGKey(0)
    k_x, k_wih, k_whh, k_bih, k_bhh = jax.random.split(key, 5)

    # Deterministic synthetic parameters (PyTorch nn.RNN-style uniform init, U(-1/sqrt(H), 1/sqrt(H))).
    bound = 1.0 / (dim ** 0.5)
    w_ih_t = jax.random.uniform(k_wih, (dim, dim), jnp.float32, -bound, bound)  # = W_ih^T
    w_hh_t = jax.random.uniform(k_whh, (dim, dim), jnp.float32, -bound, bound)  # = W_hh^T
    b_ih = jax.random.uniform(k_bih, (dim,), jnp.float32, -bound, bound)
    b_hh = jax.random.uniform(k_bhh, (dim,), jnp.float32, -bound, bound)
    bias = b_ih + b_hh                                                          # (dim,)

    # Inputs: batch_first sequence + right-padded attention mask (lengths 8 and 5).
    # TODO(synk): pack_padded_sequence rejects zero-length rows and non-contiguous masks;
    #             this kernel assumes right-padded masks (lengths = contiguous prefix).
    x = jax.random.normal(k_x, (bsz, seq_len, dim), jnp.float32)
    lengths = jnp.array([8, 5], jnp.int32)
    attention_mask = (jnp.arange(seq_len)[None, :] < lengths[:, None]).astype(jnp.int32)

    output, hidden = rnn_wrapper_forward(x, attention_mask, w_ih_t, w_hh_t, bias)
    jax.block_until_ready((output, hidden))

    ref_out, ref_h = _reference_forward(x, attention_mask, w_ih_t, w_hh_t, bias)
    assert output.shape == (bsz, seq_len, dim) and hidden.shape == (1, bsz, dim)
    assert jnp.allclose(output, ref_out, atol=2e-5), "output mismatch vs reference"
    assert jnp.allclose(hidden, ref_h, atol=2e-5), "hidden mismatch vs reference"

    print("KERNEL_OK")
</pallas_src>

<mosaic_0001>
module attributes {stable_mosaic.version = 11 : i64} {
  func.func @_rnn_chunk_kernel(%arg0: i32, %arg1: i32, %arg2: memref<8x8x128xf32, #tpu.memory_space<vmem>>, %arg3: memref<8x1xi32, #tpu.memory_space<vmem>>, %arg4: memref<128x128xf32, #tpu.memory_space<vmem>>, %arg5: memref<128x128xf32, #tpu.memory_space<vmem>>, %arg6: memref<1x128xf32, #tpu.memory_space<vmem>>, %arg7: memref<8x8x128xf32, #tpu.memory_space<vmem>>, %arg8: memref<8x128xf32, #tpu.memory_space<vmem>>, %arg9: memref<64x128xf32, #tpu.memory_space<vmem>>, %arg10: memref<8x128xf32, #tpu.memory_space<vmem>>) attributes {dimension_semantics = [#tpu.dimension_semantics<parallel>, #tpu.dimension_semantics<arbitrary>], iteration_bounds = array<i64: 1, 1>, scalar_prefetch = 0 : i64, scratch_operands = 2 : i64, tpu.core_type = #tpu.core_type<tc>, window_params = [{transform_indices = @transform_0, window_bounds = array<i64: 8, 8, 128>}, {transform_indices = @transform_1, window_bounds = array<i64: 8, 1>}, {pipeline_mode = #tpu.pipeline_mode<synchronous>, transform_indices = @transform_2, window_bounds = array<i64: 128, 128>}, {pipeline_mode = #tpu.pipeline_mode<synchronous>, transform_indices = @transform_3, window_bounds = array<i64: 128, 128>}, {pipeline_mode = #tpu.pipeline_mode<synchronous>, transform_indices = @transform_4, window_bounds = array<i64: 1, 128>}, {transform_indices = @transform_5, window_bounds = array<i64: 8, 8, 128>}, {transform_indices = @transform_6, window_bounds = array<i64: 8, 128>}]} {
    %c0_i32 = arith.constant 0 : i32
    %0 = arith.cmpi eq, %arg1, %c0_i32 : i32
    %1 = arith.extui %0 : i1 to i32
    %c0_i32_0 = arith.constant 0 : i32
    %2 = arith.cmpi ne, %1, %c0_i32_0 : i32
    scf.if %2 {
      %cst_69 = arith.constant 0.000000e+00 : f32
      %155 = vector.broadcast %cst_69 : f32 to vector<8x128xf32>
      %c0_70 = arith.constant 0 : index
      %c0_71 = arith.constant 0 : index
      %156 = vector.load %arg10[%c0_70, %c0_71] : memref<8x128xf32, #tpu.memory_space<vmem>>, vector<8x128xf32>
      tpu.vector_store %arg10[%c0_70, %c0_71], %155 {strides = array<i32>} : memref<8x128xf32, #tpu.memory_space<vmem>>, vector<8x128xf32>,
    } else {
    }
    %c0 = arith.constant 0 : index
    %c0_1 = arith.constant 0 : index
    %c0_2 = arith.constant 0 : index
    %3 = vector.load %arg2[%c0, %c0_1, %c0_2] : memref<8x8x128xf32, #tpu.memory_space<vmem>>, vector<8x8x128xf32>
    %4 = vector.shape_cast %3 : vector<8x8x128xf32> to vector<64x128xf32>
    %c0_3 = arith.constant 0 : index
    %c0_4 = arith.constant 0 : index
    %5 = vector.load %arg4[%c0_3, %c0_4] : memref<128x128xf32, #tpu.memory_space<vmem>>, vector<128x128xf32>
    %cst = arith.constant dense<0.000000e+00> : vector<64x128xf32>
    %6 = tpu.matmul %4, %5, %cst {dimension_numbers = #tpu.dot_dimension_numbers<[1], [0], [0], [1], [0, 0, 1, 1], [], []>} : vector<64x128xf32>, vector<128x128xf32>, vector<64x128xf32> -> vector<64x128xf32>
    %c0_5 = arith.constant 0 : index
    %c0_6 = arith.constant 0 : index
    %7 = vector.load %arg6[%c0_5, %c0_6] : memref<1x128xf32, #tpu.memory_space<vmem>>, vector<1x128xf32>
    %8 = vector.broadcast %7 : vector<1x128xf32> to vector<64x128xf32>
    %9 = arith.addf %6, %8 : vector<64x128xf32>
    %c0_7 = arith.constant 0 : index
    %c0_8 = arith.constant 0 : index
    %10 = vector.load %arg9[%c0_7, %c0_8] : memref<64x128xf32, #tpu.memory_space<vmem>>, vector<64x128xf32>
    tpu.vector_store %arg9[%c0_7, %c0_8], %9 {strides = array<i32>} : memref<64x128xf32, #tpu.memory_space<vmem>>, vector<64x128xf32>,
    %c0_9 = arith.constant 0 : index
    %c0_10 = arith.constant 0 : index
    %11 = vector.load %arg3[%c0_9, %c0_10] : memref<8x1xi32, #tpu.memory_space<vmem>>, vector<8x1xi32>
    %c0_11 = arith.constant 0 : index
    %c0_12 = arith.constant 0 : index
    %12 = vector.load %arg5[%c0_11, %c0_12] : memref<128x128xf32, #tpu.memory_space<vmem>>, vector<128x128xf32>
    %c0_13 = arith.constant 0 : index
    %c0_14 = arith.constant 0 : index
    %13 = vector.load %arg10[%c0_13, %c0_14] : memref<8x128xf32, #tpu.memory_space<vmem>>, vector<8x128xf32>
    %c8_i32 = arith.constant 8 : i32
    %14 = arith.muli %arg1, %c8_i32 : i32
    %c0_15 = arith.constant 0 : index
    %c0_16 = arith.constant 0 : index
    %15 = tpu.strided_load %arg9[%c0_15, %c0_16] {strides = array<i32: 8, 1>} : memref<64x128xf32, #tpu.memory_space<vmem>>, vector<8x128xf32>
    %cst_17 = arith.constant dense<0.000000e+00> : vector<8x128xf32>
    %16 = tpu.matmul %13, %12, %cst_17 {dimension_numbers = #tpu.dot_dimension_numbers<[1], [0], [0], [1], [0, 0, 1, 1], [], []>} : vector<8x128xf32>, vector<128x128xf32>, vector<8x128xf32> -> vector<8x128xf32>
    %17 = arith.addf %15, %16 : vector<8x128xf32>
    %18 = math.tanh %17 : vector<8x128xf32>
    %c0_i32_18 = arith.constant 0 : i32
    %19 = arith.addi %14, %c0_i32_18 : i32
    %20 = vector.broadcast %19 : i32 to vector<8x1xi32>
    %21 = arith.cmpi slt, %20, %11 : vector<8x1xi32>
    %22 = vector.shape_cast %21 : vector<8x1xi1> to vector<8x1xi1>
    %23 = vector.broadcast %22 : vector<8x1xi1> to vector<8x128xi1>
    %24 = arith.select %23, %18, %13 : vector<8x128xi1>, vector<8x128xf32>
    %cst_19 = arith.constant 0.000000e+00 : f32
    %25 = vector.shape_cast %21 : vector<8x1xi1> to vector<8x1xi1>
    %26 = vector.broadcast %25 : vector<8x1xi1> to vector<8x128xi1>
    %27 = vector.broadcast %cst_19 : f32 to vector<8x128xf32>
    %28 = arith.select %26, %18, %27 : vector<8x128xi1>, vector<8x128xf32>
    %c0_20 = arith.constant 0 : index
    %c0_21 = arith.constant 0 : index
    %c0_22 = arith.constant 0 : index
    %29 = vector.load %arg7[%c0_20, %c0_21, %c0_22] : memref<8x8x128xf32, #tpu.memory_space<vmem>>, vector<8x1x128xf32>
    %30 = vector.shape_cast %29 : vector<8x1x128xf32> to vector<8x128xf32>
    %31 = vector.shape_cast %28 : vector<8x128xf32> to vector<8x1x128xf32>
    tpu.vector_store %arg7[%c0_20, %c0_21, %c0_22], %31 {strides = array<i32>} : memref<8x8x128xf32, #tpu.memory_space<vmem>>, vector<8x1x128xf32>,
    %c1 = arith.constant 1 : index
    %c0_23 = arith.constant 0 : index
    %32 = tpu.strided_load %arg9[%c1, %c0_23] {strides = array<i32: 8, 1>} : memref<64x128xf32, #tpu.memory_space<vmem>>, vector<8x128xf32>
    %cst_24 = arith.constant dense<0.000000e+00> : vector<8x128xf32>
    %33 = tpu.matmul %24, %12, %cst_24 {dimension_numbers = #tpu.dot_dimension_numbers<[1], [0], [0], [1], [0, 0, 1, 1], [], []>} : vector<8x128xf32>, vector<128x128xf32>, vector<8x128xf32> -> vector<8x128xf32>
    %34 = arith.addf %32, %33 : vector<8x128xf32>
    %35 = math.tanh %34 : vector<8x128xf32>
    %c1_i32 = arith.constant 1 : i32
    %36 = arith.addi %14, %c1_i32 : i32
    %37 = vector.broadcast %36 : i32 to vector<8x1xi32>
    %38 = arith.cmpi slt, %37, %11 : vector<8x1xi32>
    %39 = vector.shape_cast %38 : vector<8x1xi1> to vector<8x1xi1>
    %40 = vector.broadcast %39 : vector<8x1xi1> to vector<8x128xi1>
    %41 = arith.select %40, %35, %24 : vector<8x128xi1>, vector<8x128xf32>
    %cst_25 = arith.constant 0.000000e+00 : f32
    %42 = vector.shape_cast %38 : vector<8x1xi1> to vector<8x1xi1>
    %43 = vector.broadcast %42 : vector<8x1xi1> to vector<8x128xi1>
    %44 = vector.broadcast %cst_25 : f32 to vector<8x128xf32>
    %45 = arith.select %43, %35, %44 : vector<8x128xi1>, vector<8x128xf32>
    %c0_26 = arith.constant 0 : index
    %c1_27 = arith.constant 1 : index
    %c0_28 = arith.constant 0 : index
    %46 = vector.load %arg7[%c0_26, %c1_27, %c0_28] : memref<8x8x128xf32, #tpu.memory_space<vmem>>, vector<8x1x128xf32>
    %47 = vector.shape_cast %46 : vector<8x1x128xf32> to vector<8x128xf32>
    %48 = vector.shape_cast %45 : vector<8x128xf32> to vector<8x1x128xf32>
    tpu.vector_store %arg7[%c0_26, %c1_27, %c0_28], %48 {strides = array<i32>} : memref<8x8x128xf32, #tpu.memory_space<vmem>>, vector<8x1x128xf32>,
    %c2 = arith.constant 2 : index
    %c0_29 = arith.constant 0 : index
    %49 = tpu.strided_load %arg9[%c2, %c0_29] {strides = array<i32: 8, 1>} : memref<64x128xf32, #tpu.memory_space<vmem>>, vector<8x128xf32>
    %cst_30 = arith.constant dense<0.000000e+00> : vector<8x128xf32>
    %50 = tpu.matmul %41, %12, %cst_30 {dimension_numbers = #tpu.dot_dimension_numbers<[1], [0], [0], [1], [0, 0, 1, 1], [], []>} : vector<8x128xf32>, vector<128x128xf32>, vector<8x128xf32> -> vector<8x128xf32>
    %51 = arith.addf %49, %50 : vector<8x128xf32>
    %52 = math.tanh %51 : vector<8x128xf32>
    %c2_i32 = arith.constant 2 : i32
    %53 = arith.addi %14, %c2_i32 : i32
    %54 = vector.broadcast %53 : i32 to vector<8x1xi32>
    %55 = arith.cmpi slt, %54, %11 : vector<8x1xi32>
    %56 = vector.shape_cast %55 : vector<8x1xi1> to vector<8x1xi1>
    %57 = vector.broadcast %56 : vector<8x1xi1> to vector<8x128xi1>
    %58 = arith.select %57, %52, %41 : vector<8x128xi1>, vector<8x128xf32>
    %cst_31 = arith.constant 0.000000e+00 : f32
    %59 = vector.shape_cast %55 : vector<8x1xi1> to vector<8x1xi1>
    %60 = vector.broadcast %59 : vector<8x1xi1> to vector<8x128xi1>
    %61 = vector.broadcast %cst_31 : f32 to vector<8x128xf32>
    %62 = arith.select %60, %52, %61 : vector<8x128xi1>, vector<8x128xf32>
    %c0_32 = arith.constant 0 : index
    %c2_33 = arith.constant 2 : index
    %c0_34 = arith.constant 0 : index
    %63 = vector.load %arg7[%c0_32, %c2_33, %c0_34] : memref<8x8x128xf32, #tpu.memory_space<vmem>>, vector<8x1x128xf32>
    %64 = vector.shape_cast %63 : vector<8x1x128xf32> to vector<8x128xf32>
    %65 = vector.shape_cast %62 : vector<8x128xf32> to vector<8x1x128xf32>
    tpu.vector_store %arg7[%c0_32, %c2_33, %c0_34], %65 {strides = array<i32>} : memref<8x8x128xf32, #tpu.memory_space<vmem>>, vector<8x1x128xf32>,
    %c3 = arith.constant 3 : index
    %c0_35 = arith.constant 0 : index
    %66 = tpu.strided_load %arg9[%c3, %c0_35] {strides = array<i32: 8, 1>} : memref<64x128xf32, #tpu.memory_space<vmem>>, vector<8x128xf32>
    %cst_36 = arith.constant dense<0.000000e+00> : vector<8x128xf32>
    %67 = tpu.matmul %58, %12, %cst_36 {dimension_numbers = #tpu.dot_dimension_numbers<[1], [0], [0], [1], [0, 0, 1, 1], [], []>} : vector<8x128xf32>, vector<128x128xf32>, vector<8x128xf32> -> vector<8x128xf32>
    %68 = arith.addf %66, %67 : vector<8x128xf32>
    %69 = math.tanh %68 : vector<8x128xf32>
    %c3_i32 = arith.constant 3 : i32
    %70 = arith.addi %14, %c3_i32 : i32
    %71 = vector.broadcast %70 : i32 to vector<8x1xi32>
    %72 = arith.cmpi slt, %71, %11 : vector<8x1xi32>
    %73 = vector.shape_cast %72 : vector<8x1xi1> to vector<8x1xi1>
    %74 = vector.broadcast %73 : vector<8x1xi1> to vector<8x128xi1>
    %75 = arith.select %74, %69, %58 : vector<8x128xi1>, vector<8x128xf32>
    %cst_37 = arith.constant 0.000000e+00 : f32
    %76 = vector.shape_cast %72 : vector<8x1xi1> to vector<8x1xi1>
    %77 = vector.broadcast %76 : vector<8x1xi1> to vector<8x128xi1>
    %78 = vector.broadcast %cst_37 : f32 to vector<8x128xf32>
    %79 = arith.select %77, %69, %78 : vector<8x128xi1>, vector<8x128xf32>
    %c0_38 = arith.constant 0 : index
    %c3_39 = arith.constant 3 : index
    %c0_40 = arith.constant 0 : index
    %80 = vector.load %arg7[%c0_38, %c3_39, %c0_40] : memref<8x8x128xf32, #tpu.memory_space<vmem>>, vector<8x1x128xf32>
    %81 = vector.shape_cast %80 : vector<8x1x128xf32> to vector<8x128xf32>
    %82 = vector.shape_cast %79 : vector<8x128xf32> to vector<8x1x128xf32>
    tpu.vector_store %arg7[%c0_38, %c3_39, %c0_40], %82 {strides = array<i32>} : memref<8x8x128xf32, #tpu.memory_space<vmem>>, vector<8x1x128xf32>,
    %c4 = arith.constant 4 : index
    %c0_41 = arith.constant 0 : index
    %83 = tpu.strided_load %arg9[%c4, %c0_41] {strides = array<i32: 8, 1>} : memref<64x128xf32, #tpu.memory_space<vmem>>, vector<8x128xf32>
    %cst_42 = arith.constant dense<0.000000e+00> : vector<8x128xf32>
    %84 = tpu.matmul %75, %12, %cst_42 {dimension_numbers = #tpu.dot_dimension_numbers<[1], [0], [0], [1], [0, 0, 1, 1], [], []>} : vector<8x128xf32>, vector<128x128xf32>, vector<8x128xf32> -> vector<8x128xf32>
    %85 = arith.addf %83, %84 : vector<8x128xf32>
    %86 = math.tanh %85 : vector<8x128xf32>
    %c4_i32 = arith.constant 4 : i32
    %87 = arith.addi %14, %c4_i32 : i32
    %88 = vector.broadcast %87 : i32 to vector<8x1xi32>
    %89 = arith.cmpi slt, %88, %11 : vector<8x1xi32>
    %90 = vector.shape_cast %89 : vector<8x1xi1> to vector<8x1xi1>
    %91 = vector.broadcast %90 : vector<8x1xi1> to vector<8x128xi1>
    %92 = arith.select %91, %86, %75 : vector<8x128xi1>, vector<8x128xf32>
    %cst_43 = arith.constant 0.000000e+00 : f32
    %93 = vector.shape_cast %89 : vector<8x1xi1> to vector<8x1xi1>
    %94 = vector.broadcast %93 : vector<8x1xi1> to vector<8x128xi1>
    %95 = vector.broadcast %cst_43 : f32 to vector<8x128xf32>
    %96 = arith.select %94, %86, %95 : vector<8x128xi1>, vector<8x128xf32>
    %c0_44 = arith.constant 0 : index
    %c4_45 = arith.constant 4 : index
    %c0_46 = arith.constant 0 : index
    %97 = vector.load %arg7[%c0_44, %c4_45, %c0_46] : memref<8x8x128xf32, #tpu.memory_space<vmem>>, vector<8x1x128xf32>
    %98 = vector.shape_cast %97 : vector<8x1x128xf32> to vector<8x128xf32>
    %99 = vector.shape_cast %96 : vector<8x128xf32> to vector<8x1x128xf32>
    tpu.vector_store %arg7[%c0_44, %c4_45, %c0_46], %99 {strides = array<i32>} : memref<8x8x128xf32, #tpu.memory_space<vmem>>, vector<8x1x128xf32>,
    %c5 = arith.constant 5 : index
    %c0_47 = arith.constant 0 : index
    %100 = tpu.strided_load %arg9[%c5, %c0_47] {strides = array<i32: 8, 1>} : memref<64x128xf32, #tpu.memory_space<vmem>>, vector<8x128xf32>
    %cst_48 = arith.constant dense<0.000000e+00> : vector<8x128xf32>
    %101 = tpu.matmul %92, %12, %cst_48 {dimension_numbers = #tpu.dot_dimension_numbers<[1], [0], [0], [1], [0, 0, 1, 1], [], []>} : vector<8x128xf32>, vector<128x128xf32>, vector<8x128xf32> -> vector<8x128xf32>
    %102 = arith.addf %100, %101 : vector<8x128xf32>
    %103 = math.tanh %102 : vector<8x128xf32>
    %c5_i32 = arith.constant 5 : i32
    %104 = arith.addi %14, %c5_i32 : i32
    %105 = vector.broadcast %104 : i32 to vector<8x1xi32>
    %106 = arith.cmpi slt, %105, %11 : vector<8x1xi32>
    %107 = vector.shape_cast %106 : vector<8x1xi1> to vector<8x1xi1>
    %108 = vector.broadcast %107 : vector<8x1xi1> to vector<8x128xi1>
    %109 = arith.select %108, %103, %92 : vector<8x128xi1>, vector<8x128xf32>
    %cst_49 = arith.constant 0.000000e+00 : f32
    %110 = vector.shape_cast %106 : vector<8x1xi1> to vector<8x1xi1>
    %111 = vector.broadcast %110 : vector<8x1xi1> to vector<8x128xi1>
    %112 = vector.broadcast %cst_49 : f32 to vector<8x128xf32>
    %113 = arith.select %111, %103, %112 : vector<8x128xi1>, vector<8x128xf32>
    %c0_50 = arith.constant 0 : index
    %c5_51 = arith.constant 5 : index
    %c0_52 = arith.constant 0 : index
    %114 = vector.load %arg7[%c0_50, %c5_51, %c0_52] : memref<8x8x128xf32, #tpu.memory_space<vmem>>, vector<8x1x128xf32>
    %115 = vector.shape_cast %114 : vector<8x1x128xf32> to vector<8x128xf32>
    %116 = vector.shape_cast %113 : vector<8x128xf32> to vector<8x1x128xf32>
    tpu.vector_store %arg7[%c0_50, %c5_51, %c0_52], %116 {strides = array<i32>} : memref<8x8x128xf32, #tpu.memory_space<vmem>>, vector<8x1x128xf32>,
    %c6 = arith.constant 6 : index
    %c0_53 = arith.constant 0 : index
    %117 = tpu.strided_load %arg9[%c6, %c0_53] {strides = array<i32: 8, 1>} : memref<64x128xf32, #tpu.memory_space<vmem>>, vector<8x128xf32>
    %cst_54 = arith.constant dense<0.000000e+00> : vector<8x128xf32>
    %118 = tpu.matmul %109, %12, %cst_54 {dimension_numbers = #tpu.dot_dimension_numbers<[1], [0], [0], [1], [0, 0, 1, 1], [], []>} : vector<8x128xf32>, vector<128x128xf32>, vector<8x128xf32> -> vector<8x128xf32>
    %119 = arith.addf %117, %118 : vector<8x128xf32>
    %120 = math.tanh %119 : vector<8x128xf32>
    %c6_i32 = arith.constant 6 : i32
    %121 = arith.addi %14, %c6_i32 : i32
    %122 = vector.broadcast %121 : i32 to vector<8x1xi32>
    %123 = arith.cmpi slt, %122, %11 : vector<8x1xi32>
    %124 = vector.shape_cast %123 : vector<8x1xi1> to vector<8x1xi1>
    %125 = vector.broadcast %124 : vector<8x1xi1> to vector<8x128xi1>
    %126 = arith.select %125, %120, %109 : vector<8x128xi1>, vector<8x128xf32>
    %cst_55 = arith.constant 0.000000e+00 : f32
    %127 = vector.shape_cast %123 : vector<8x1xi1> to vector<8x1xi1>
    %128 = vector.broadcast %127 : vector<8x1xi1> to vector<8x128xi1>
    %129 = vector.broadcast %cst_55 : f32 to vector<8x128xf32>
    %130 = arith.select %128, %120, %129 : vector<8x128xi1>, vector<8x128xf32>
    %c0_56 = arith.constant 0 : index
    %c6_57 = arith.constant 6 : index
    %c0_58 = arith.constant 0 : index
    %131 = vector.load %arg7[%c0_56, %c6_57, %c0_58] : memref<8x8x128xf32, #tpu.memory_space<vmem>>, vector<8x1x128xf32>
    %132 = vector.shape_cast %131 : vector<8x1x128xf32> to vector<8x128xf32>
    %133 = vector.shape_cast %130 : vector<8x128xf32> to vector<8x1x128xf32>
    tpu.vector_store %arg7[%c0_56, %c6_57, %c0_58], %133 {strides = array<i32>} : memref<8x8x128xf32, #tpu.memory_space<vmem>>, vector<8x1x128xf32>,
    %c7 = arith.constant 7 : index
    %c0_59 = arith.constant 0 : index
    %134 = tpu.strided_load %arg9[%c7, %c0_59] {strides = array<i32: 8, 1>} : memref<64x128xf32, #tpu.memory_space<vmem>>, vector<8x128xf32>
    %cst_60 = arith.constant dense<0.000000e+00> : vector<8x128xf32>
    %135 = tpu.matmul %126, %12, %cst_60 {dimension_numbers = #tpu.dot_dimension_numbers<[1], [0], [0], [1], [0, 0, 1, 1], [], []>} : vector<8x128xf32>, vector<128x128xf32>, vector<8x128xf32> -> vector<8x128xf32>
    %136 = arith.addf %134, %135 : vector<8x128xf32>
    %137 = math.tanh %136 : vector<8x128xf32>
    %c7_i32 = arith.constant 7 : i32
    %138 = arith.addi %14, %c7_i32 : i32
    %139 = vector.broadcast %138 : i32 to vector<8x1xi32>
    %140 = arith.cmpi slt, %139, %11 : vector<8x1xi32>
    %141 = vector.shape_cast %140 : vector<8x1xi1> to vector<8x1xi1>
    %142 = vector.broadcast %141 : vector<8x1xi1> to vector<8x128xi1>
    %143 = arith.select %142, %137, %126 : vector<8x128xi1>, vector<8x128xf32>
    %cst_61 = arith.constant 0.000000e+00 : f32
    %144 = vector.shape_cast %140 : vector<8x1xi1> to vector<8x1xi1>
    %145 = vector.broadcast %144 : vector<8x1xi1> to vector<8x128xi1>
    %146 = vector.broadcast %cst_61 : f32 to vector<8x128xf32>
    %147 = arith.select %145, %137, %146 : vector<8x128xi1>, vector<8x128xf32>
    %c0_62 = arith.constant 0 : index
    %c7_63 = arith.constant 7 : index
    %c0_64 = arith.constant 0 : index
    %148 = vector.load %arg7[%c0_62, %c7_63, %c0_64] : memref<8x8x128xf32, #tpu.memory_space<vmem>>, vector<8x1x128xf32>
    %149 = vector.shape_cast %148 : vector<8x1x128xf32> to vector<8x128xf32>
    %150 = vector.shape_cast %147 : vector<8x128xf32> to vector<8x1x128xf32>
    tpu.vector_store %arg7[%c0_62, %c7_63, %c0_64], %150 {strides = array<i32>} : memref<8x8x128xf32, #tpu.memory_space<vmem>>, vector<8x1x128xf32>,
    %c0_65 = arith.constant 0 : index
    %c0_66 = arith.constant 0 : index
    %151 = vector.load %arg10[%c0_65, %c0_66] : memref<8x128xf32, #tpu.memory_space<vmem>>, vector<8x128xf32>
    tpu.vector_store %arg10[%c0_65, %c0_66], %143 {strides = array<i32>} : memref<8x128xf32, #tpu.memory_space<vmem>>, vector<8x128xf32>,
    %c0_i32_67 = arith.constant 0 : i32
    %152 = arith.cmpi eq, %arg1, %c0_i32_67 : i32
    %153 = arith.extui %152 : i1 to i32
    %c0_i32_68 = arith.constant 0 : i32
    %154 = arith.cmpi ne, %153, %c0_i32_68 : i32
    scf.if %154 {
      %c0_69 = arith.constant 0 : index
      %c0_70 = arith.constant 0 : index
      %155 = vector.load %arg8[%c0_69, %c0_70] : memref<8x128xf32, #tpu.memory_space<vmem>>, vector<8x128xf32>
      tpu.vector_store %arg8[%c0_69, %c0_70], %143 {strides = array<i32>} : memref<8x128xf32, #tpu.memory_space<vmem>>, vector<8x128xf32>,
    } else {
    }
    return
  }
  func.func @transform_0(%arg0: i32, %arg1: i32) -> (i32, i32, i32) {
    %c0_i32 = arith.constant 0 : i32
    %c0_i32_0 = arith.constant 0 : i32
    return %arg0, %arg1, %c0_i32 : i32, i32, i32
  }
  func.func @transform_1(%arg0: i32, %arg1: i32) -> (i32, i32) {
    %c0_i32 = arith.constant 0 : i32
    %c0_i32_0 = arith.constant 0 : i32
    return %arg0, %c0_i32 : i32, i32
  }
  func.func @transform_2(%arg0: i32, %arg1: i32) -> (i32, i32) {
    %c0_i32 = arith.constant 0 : i32
    %c0_i32_0 = arith.constant 0 : i32
    %c0_i32_1 = arith.constant 0 : i32
    return %c0_i32, %c0_i32_0 : i32, i32
  }
  func.func @transform_3(%arg0: i32, %arg1: i32) -> (i32, i32) {
    %c0_i32 = arith.constant 0 : i32
    %c0_i32_0 = arith.constant 0 : i32
    %c0_i32_1 = arith.constant 0 : i32
    return %c0_i32, %c0_i32_0 : i32, i32
  }
  func.func @transform_4(%arg0: i32, %arg1: i32) -> (i32, i32) {
    %c0_i32 = arith.constant 0 : i32
    %c0_i32_0 = arith.constant 0 : i32
    %c0_i32_1 = arith.constant 0 : i32
    return %c0_i32, %c0_i32_0 : i32, i32
  }
  func.func @transform_5(%arg0: i32, %arg1: i32) -> (i32, i32, i32) {
    %c0_i32 = arith.constant 0 : i32
    %c0_i32_0 = arith.constant 0 : i32
    return %arg0, %arg1, %c0_i32 : i32, i32, i32
  }
  func.func @transform_6(%arg0: i32, %arg1: i32) -> (i32, i32) {
    %c0_i32 = arith.constant 0 : i32
    %c0_i32_0 = arith.constant 0 : i32
    return %arg0, %c0_i32 : i32, i32
  }
}

</mosaic_0001>

<llo_original>
// kernel: rnn_wrapper_forward.1
$region0: #{rnn_wrapper_forward.1}
  #allocation0 [shape = 'u32[]', space=smem, size = 0x4, offset = 0x4, fixed_abs, tag = 'smem constant byte address 0x4 - core index']
  #allocation1 [shape = 'u32[144,128]{1,0:T(1,128)}', space=vmem, size = 0x12000, scoped, tag = 'internal scratch']
  #allocation2 [shape = 'f32[64,128]{1,0:T(8,128)}', space=vmem, size = 0x8000, scoped, tag = 'scratch operand']
  #allocation3 [shape = 'f32[8,128]{1,0:T(8,128)}', space=vmem, size = 0x1000, scoped, tag = 'scratch operand']
  %s0 = inlined_call_operand.vmem [shape: f32[8,8,128], index: 0, kind: input, shape index: {}]
  %s1 = inlined_call_operand.vmem [shape: s32[8,1], index: 1, kind: input, shape index: {}]
  %s2 = inlined_call_operand.vmem [shape: f32[128,128], index: 2, kind: input, shape index: {}]
  %s3 = inlined_call_operand.vmem [shape: f32[128,128], index: 3, kind: input, shape index: {}]
  %s4 = inlined_call_operand.vmem [shape: f32[1,128], index: 4, kind: input, shape index: {}]
  %s5 = inlined_call_operand.vmem [shape: f32[8,8,128], index: 5, kind: output, shape index: {0}]
  %s6 = inlined_call_operand.vmem [shape: f32[8,128], index: 6, kind: output, shape index: {1}]
  %7 = xla_tuple %s5, %s6
  %s8 = sld [smem:[#allocation0]]
  $region46: #{rnn_wrapper_forward.1} parent=0
    _
  %s10 = ssub.s32 1, %s8
  %s11 = scalar_select 0, %s10, %s8
  // Predicated region
  $region2: #{rnn_wrapper_forward.1} parent=0 // pred_check
    _
  $region3: #{rnn_wrapper_forward.1} parent=0 // pred_check_branch
    %13 = sbr.rel (0) target = $region5
  $region4: #{rnn_wrapper_forward.1} parent=0 // pred_region
    _
  $region5: #{rnn_wrapper_forward.1} parent=0 // pred_fallthru
    _
  // Predicated region
  $region6: #{rnn_wrapper_forward.1} parent=0 // pred_check
    _
  $region7: #{rnn_wrapper_forward.1} parent=0 // pred_check_branch
    %15 = sbr.rel (0) target = $region9
  $region8: #{rnn_wrapper_forward.1} parent=0 // pred_region
    _
  $region9: #{rnn_wrapper_forward.1} parent=0 // pred_fallthru
    _
  // Predicated region
  $region10: #{rnn_wrapper_forward.1} parent=0 // pred_check
    _
  $region11: #{rnn_wrapper_forward.1} parent=0 // pred_check_branch
    %17 = sbr.rel (0) target = $region13
  $region12: #{rnn_wrapper_forward.1} parent=0 // pred_region
    _
  $region13: #{rnn_wrapper_forward.1} parent=0 // pred_fallthru
    _
  // Predicated region
  $region14: #{rnn_wrapper_forward.1} parent=0 // pred_check
    _
  $region15: #{rnn_wrapper_forward.1} parent=0 // pred_check_branch
    %19 = sbr.rel (0) target = $region17
  $region16: #{rnn_wrapper_forward.1} parent=0 // pred_region
    _
  $region17: #{rnn_wrapper_forward.1} parent=0 // pred_fallthru
    _
  // Predicated region
  $region18: #{rnn_wrapper_forward.1} parent=0 // pred_check
    _
  $region19: #{rnn_wrapper_forward.1} parent=0 // pred_check_branch
    %21 = sbr.rel (0) target = $region21
  $region20: #{rnn_wrapper_forward.1} parent=0 // pred_region
    _
  $region21: #{rnn_wrapper_forward.1} parent=0 // pred_fallthru
    _
  %p22 = scmp.eq.s32.totalorder 0, 0
  // Predicated region
  $region22: #{rnn_wrapper_forward.1} parent=0 // pred_check
    %p23 = pneg %p22
  $region23: #{rnn_wrapper_forward.1} parent=0 // pred_check_branch
    %25 = sbr.rel (%p23) target = $region25
  $region24: #{rnn_wrapper_forward.1} parent=0 // pred_region
    %26 = vst [vmem:[#allocation3] sm:$0xff] 0.0
  $region25: #{rnn_wrapper_forward.1} parent=0 // pred_fallthru
    _
  %v27 = vld [vmem:[%s0] sm:$0xff]
  %v28 = vld [vmem:[%s0 + $0x8] sm:$0xff]
  %v29 = vld [vmem:[%s0 + $0x10] sm:$0xff]
  %v30 = vld [vmem:[%s0 + $0x18] sm:$0xff]
  %v31 = vld [vmem:[%s0 + $0x20] sm:$0xff]
  %v32 = vld [vmem:[%s0 + $0x28] sm:$0xff]
  %v33 = vld [vmem:[%s0 + $0x30] sm:$0xff]
  %v34 = vld [vmem:[%s0 + $0x38] sm:$0xff]
  %v35 = vld [vmem:[%s2] sm:$0xff]
  %v36 = vld [vmem:[%s2 + $0x8] sm:$0xff]
  %v37 = vld [vmem:[%s2 + $0x10] sm:$0xff]
  %v38 = vld [vmem:[%s2 + $0x18] sm:$0xff]
  %v39 = vld [vmem:[%s2 + $0x20] sm:$0xff]
  %v40 = vld [vmem:[%s2 + $0x28] sm:$0xff]
  %v41 = vld [vmem:[%s2 + $0x30] sm:$0xff]
  %v42 = vld [vmem:[%s2 + $0x38] sm:$0xff]
  %v43 = vld [vmem:[%s2 + $0x40] sm:$0xff]
  %v44 = vld [vmem:[%s2 + $0x48] sm:$0xff]
  %v45 = vld [vmem:[%s2 + $0x50] sm:$0xff]
  %v46 = vld [vmem:[%s2 + $0x58] sm:$0xff]
  %v47 = vld [vmem:[%s2 + $0x60] sm:$0xff]
  %v48 = vld [vmem:[%s2 + $0x68] sm:$0xff]
  %v49 = vld [vmem:[%s2 + $0x70] sm:$0xff]
  %v50 = vld [vmem:[%s2 + $0x78] sm:$0xff]
  %v51 = vld [vmem:[%s4] sm:$0x1]
  %v53 = vlaneseq
  %v54 = vshrl.u32 %v53, 7
  %v55 = vsub.s32 0, %v54
  %v56 = vrot.slane %v51, %v55
  %58 = vmatprep.subr.mxu0 0.0
  %59 = vmatpush1.msra.mxu0 %v35
  %60 = vmatprep.subr.mxu0 0.0
  %61 = vmatpush1.msra.mxu0 %v36
  %62 = vmatprep.subr.mxu0 0.0
  %63 = vmatpush1.msra.mxu0 %v37
  %64 = vmatprep.subr.mxu0 0.0
  %65 = vmatpush1.msra.mxu0 %v38
  %66 = vmatprep.subr.mxu0 0.0
  %67 = vmatpush1.msra.mxu0 %v39
  %68 = vmatprep.subr.mxu0 0.0
  %69 = vmatpush1.msra.mxu0 %v40
  %70 = vmatprep.subr.mxu0 0.0
  %71 = vmatpush1.msra.mxu0 %v41
  %72 = vmatprep.subr.mxu0 0.0
  %73 = vmatpush1.msra.mxu0 %v42
  %74 = vmatprep.subr.mxu0 0.0
  %75 = vmatpush1.msra.mxu0 %v43
  %76 = vmatprep.subr.mxu0 0.0
  %77 = vmatpush1.msra.mxu0 %v44
  %78 = vmatprep.subr.mxu0 0.0
  %79 = vmatpush1.msra.mxu0 %v45
  %80 = vmatprep.subr.mxu0 0.0
  %81 = vmatpush1.msra.mxu0 %v46
  %82 = vmatprep.subr.mxu0 0.0
  %83 = vmatpush1.msra.mxu0 %v47
  %84 = vmatprep.subr.mxu0 0.0
  %85 = vmatpush1.msra.mxu0 %v48
  %86 = vmatprep.subr.mxu0 0.0
  %87 = vmatpush1.msra.mxu0 %v49
  %88 = vmatprep.subr.mxu0 0.0
  %89 = vmatpush1.msra.mxu0 %v50
  %90 = vmatprep.subr.mxu0 0.0
  %91 = vmatpush1.msra.mxu0 0.0
  %92 = vmatprep.subr.mxu0 0.0
  %93 = vmatpush1.msra.mxu0 0.0
  %94 = vmatprep.subr.mxu0 0.0
  %95 = vmatpush1.msra.mxu0 0.0
  %96 = vmatprep.subr.mxu0 0.0
  %97 = vmatpush1.msra.mxu0 0.0
  %98 = vmatprep.subr.mxu0 0.0
  %99 = vmatpush1.msra.mxu0 0.0
  %100 = vmatprep.subr.mxu0 0.0
  %101 = vmatpush1.msra.mxu0 0.0
  %102 = vmatprep.subr.mxu0 0.0
  %103 = vmatpush1.msra.mxu0 0.0
  %104 = vmatprep.subr.mxu0 0.0
  %105 = vmatpush1.msra.mxu0 0.0
  %106 = vmatprep.subr.mxu0 0.0
  %107 = vmatpush1.msra.mxu0 0.0
  %108 = vmatprep.subr.mxu0 0.0
  %109 = vmatpush1.msra.mxu0 0.0
  %110 = vmatprep.subr.mxu0 0.0
  %111 = vmatpush1.msra.mxu0 0.0
  %112 = vmatprep.subr.mxu0 0.0
  %113 = vmatpush1.msra.mxu0 0.0
  %114 = vmatprep.subr.mxu0 0.0
  %115 = vmatpush1.msra.mxu0 0.0
  %116 = vmatprep.subr.mxu0 0.0
  %117 = vmatpush1.msra.mxu0 0.0
  %118 = vmatprep.subr.mxu0 0.0
  %119 = vmatpush1.msra.mxu0 0.0
  %120 = vmatprep.subr.mxu0 0.0
  %121 = vmatpush1.msra.mxu0 0.0
  %122 = vmatprep.mubr.f32.mxu0 0.0
  %123 = vmatmul.mubr.f32.gmra.mrb[0].mxu0 %v27
  %v124 = vpop.f32.mrb[0].mxu0
  %v125 = vadd.f32 %v56, %v124
  %v126 = vpop.f32.mrb[0].mxu0
  %127 = vmatprep.mubr.f32.mxu0 0.0
  %128 = vmatmul.mubr.f32.gmra.mrb[0].mxu0 %v28
  %v129 = vpop.f32.mrb[0].mxu0
  %v130 = vadd.f32 %v56, %v129
  %v131 = vpop.f32.mrb[0].mxu0
  %132 = vmatprep.mubr.f32.mxu0 0.0
  %133 = vmatmul.mubr.f32.gmra.mrb[0].mxu0 %v29
  %v134 = vpop.f32.mrb[0].mxu0
  %v135 = vadd.f32 %v56, %v134
  %v136 = vpop.f32.mrb[0].mxu0
  %137 = vmatprep.mubr.f32.mxu0 0.0
  %138 = vmatmul.mubr.f32.gmra.mrb[0].mxu0 %v30
  %v139 = vpop.f32.mrb[0].mxu0
  %v140 = vadd.f32 %v56, %v139
  %v141 = vpop.f32.mrb[0].mxu0
  %142 = vmatprep.mubr.f32.mxu0 0.0
  %143 = vmatmul.mubr.f32.gmra.mrb[0].mxu0 %v31
  %v144 = vpop.f32.mrb[0].mxu0
  %v145 = vadd.f32 %v56, %v144
  %v146 = vpop.f32.mrb[0].mxu0
  %147 = vmatprep.mubr.f32.mxu0 0.0
  %148 = vmatmul.mubr.f32.gmra.mrb[0].mxu0 %v32
  %v149 = vpop.f32.mrb[0].mxu0
  %v150 = vadd.f32 %v56, %v149
  %v151 = vpop.f32.mrb[0].mxu0
  %152 = vmatprep.mubr.f32.mxu0 0.0
  %153 = vmatmul.mubr.f32.gmra.mrb[0].mxu0 %v33
  %v154 = vpop.f32.mrb[0].mxu0
  %v155 = vadd.f32 %v56, %v154
  %v156 = vpop.f32.mrb[0].mxu0
  %157 = vmatprep.mubr.f32.mxu0 0.0
  %158 = vmatmul.mubr.f32.gmra.mrb[0].mxu0 %v34
  %v159 = vpop.f32.mrb[0].mxu0
  %v160 = vadd.f32 %v56, %v159
  %v161 = vpop.f32.mrb[0].mxu0
  %162 = vdwg.mxu0
  %163 = vst [vmem:[#allocation2] sm:$0xff] %v125
  %164 = vst [vmem:[#allocation2 + $0x8] sm:$0xff] %v130
  %165 = vst [vmem:[#allocation2 + $0x10] sm:$0xff] %v135
  %166 = vst [vmem:[#allocation2 + $0x18] sm:$0xff] %v140
  %167 = vst [vmem:[#allocation2 + $0x20] sm:$0xff] %v145
  %168 = vst [vmem:[#allocation2 + $0x28] sm:$0xff] %v150
  %169 = vst [vmem:[#allocation2 + $0x30] sm:$0xff] %v155
  %170 = vst [vmem:[#allocation2 + $0x38] sm:$0xff] %v160
  %v171 = vld [vmem:[%s1] sm:$0xff]
  %v172 = vld [vmem:[%s3] sm:$0xff]
  %v173 = vld [vmem:[%s3 + $0x8] sm:$0xff]
  %v174 = vld [vmem:[%s3 + $0x10] sm:$0xff]
  %v175 = vld [vmem:[%s3 + $0x18] sm:$0xff]
  %v176 = vld [vmem:[%s3 + $0x20] sm:$0xff]
  %v177 = vld [vmem:[%s3 + $0x28] sm:$0xff]
  %v178 = vld [vmem:[%s3 + $0x30] sm:$0xff]
  %v179 = vld [vmem:[%s3 + $0x38] sm:$0xff]
  %v180 = vld [vmem:[%s3 + $0x40] sm:$0xff]
  %v181 = vld [vmem:[%s3 + $0x48] sm:$0xff]
  %v182 = vld [vmem:[%s3 + $0x50] sm:$0xff]
  %v183 = vld [vmem:[%s3 + $0x58] sm:$0xff]
  %v184 = vld [vmem:[%s3 + $0x60] sm:$0xff]
  %v185 = vld [vmem:[%s3 + $0x68] sm:$0xff]
  %v186 = vld [vmem:[%s3 + $0x70] sm:$0xff]
  %v187 = vld [vmem:[%s3 + $0x78] sm:$0xff]
  %v188 = vld [vmem:[#allocation3] sm:$0xff]
  %s189 = smul.u32 0, 8
  %v190 = vld [vmem:[#allocation2] ss:$8 sm:$0xf]
  %v191 = vld [vmem:[#allocation2] ss:$8 sm:$0xf0]
  %v192 = vor.u32 %v190, %v191
  %193 = vmatprep.subr.mxu0 0.0
  %194 = vmatpush1.msra.mxu0 %v172
  %195 = vmatprep.subr.mxu0 0.0
  %196 = vmatpush1.msra.mxu0 %v173
  %197 = vmatprep.subr.mxu0 0.0
  %198 = vmatpush1.msra.mxu0 %v174
  %199 = vmatprep.subr.mxu0 0.0
  %200 = vmatpush1.msra.mxu0 %v175
  %201 = vmatprep.subr.mxu0 0.0
  %202 = vmatpush1.msra.mxu0 %v176
  %203 = vmatprep.subr.mxu0 0.0
  %204 = vmatpush1.msra.mxu0 %v177
  %205 = vmatprep.subr.mxu0 0.0
  %206 = vmatpush1.msra.mxu0 %v178
  %207 = vmatprep.subr.mxu0 0.0
  %208 = vmatpush1.msra.mxu0 %v179
  %209 = vmatprep.subr.mxu0 0.0
  %210 = vmatpush1.msra.mxu0 %v180
  %211 = vmatprep.subr.mxu0 0.0
  %212 = vmatpush1.msra.mxu0 %v181
  %213 = vmatprep.subr.mxu0 0.0
  %214 = vmatpush1.msra.mxu0 %v182
  %215 = vmatprep.subr.mxu0 0.0
  %216 = vmatpush1.msra.mxu0 %v183
  %217 = vmatprep.subr.mxu0 0.0
  %218 = vmatpush1.msra.mxu0 %v184
  %219 = vmatprep.subr.mxu0 0.0
  %220 = vmatpush1.msra.mxu0 %v185
  %221 = vmatprep.subr.mxu0 0.0
  %222 = vmatpush1.msra.mxu0 %v186
  %223 = vmatprep.subr.mxu0 0.0
  %224 = vmatpush1.msra.mxu0 %v187
  %225 = vmatprep.subr.mxu0 0.0
  %226 = vmatpush1.msra.mxu0 0.0
  %227 = vmatprep.subr.mxu0 0.0
  %228 = vmatpush1.msra.mxu0 0.0
  %229 = vmatprep.subr.mxu0 0.0
  %230 = vmatpush1.msra.mxu0 0.0
  %231 = vmatprep.subr.mxu0 0.0
  %232 = vmatpush1.msra.mxu0 0.0
  %233 = vmatprep.subr.mxu0 0.0
  %234 = vmatpush1.msra.mxu0 0.0
  %235 = vmatprep.subr.mxu0 0.0
  %236 = vmatpush1.msra.mxu0 0.0
  %237 = vmatprep.subr.mxu0 0.0
  %238 = vmatpush1.msra.mxu0 0.0
  %239 = vmatprep.subr.mxu0 0.0
  %240 = vmatpush1.msra.mxu0 0.0
  %241 = vmatprep.subr.mxu0 0.0
  %242 = vmatpush1.msra.mxu0 0.0
  %243 = vmatprep.subr.mxu0 0.0
  %244 = vmatpush1.msra.mxu0 0.0
  %245 = vmatprep.subr.mxu0 0.0
  %246 = vmatpush1.msra.mxu0 0.0
  %247 = vmatprep.subr.mxu0 0.0
  %248 = vmatpush1.msra.mxu0 0.0
  %249 = vmatprep.subr.mxu0 0.0
  %250 = vmatpush1.msra.mxu0 0.0
  %251 = vmatprep.subr.mxu0 0.0
  %252 = vmatpush1.msra.mxu0 0.0
  %253 = vmatprep.subr.mxu0 0.0
  %254 = vmatpush1.msra.mxu0 0.0
  %255 = vmatprep.subr.mxu0 0.0
  %256 = vmatpush1.msra.mxu0 0.0
  %257 = vmatprep.mubr.f32.mxu0 0.0
  %258 = vmatmul.mubr.f32.gmra.mrb[0].mxu0 %v188
  %v259 = vpop.f32.mrb[0].mxu0
  %v260 = vadd.f32 0.0, %v259
  %v261 = vpop.f32.mrb[0].mxu0
  %262 = vdwg.mxu0
  %v263 = vadd.f32 %v192, %v260
  %v264 = vtanh.pop %v263
  %v265 = vstv %s189
  %vm266 = vcmp.lt.s32.totalorder %v265, %v171
  %v267 = vsel %vm266, 1, 0
  %268 = vset.pattern.permute.xlu0 0
  %269 = vperm.xlu0 %268, %v267
  %v270 = vpop.permute.xlu0 %269
  %vm271 = vcmp.eq.s32.totalorder %v270, 1
  %v272 = vsel %vm271, %v264, %v188
  %v273 = vsel %vm271, %v264, 0.0
  %v275 = vcombine.high %v273, %v273
  %v277 = vunpack.c.l.s4 1966171168
  %v278 = vunpack.c.0.s8 %v277
  %v279 = vlaneseq
  %v280 = vshrl.u32 %v279, 7
  %v281 = vsub.s32 %v278, %v280
  %v282 = vrot.slane %v273, %v281
  %v284 = vunpack.c.l.s4 1966171168
  %v285 = vunpack.c.0.s8 %v284
  %v286 = vlaneseq
  %v287 = vshrl.u32 %v286, 7
  %v288 = vsub.s32 %v285, %v287
  %v289 = vrot.slane %v275, %v288
  %v290 = vcombine.high %v282, %v282
  %v291 = vcombine.high %v289, %v289
  %v293 = vunpack.c.l.s4 1966171168
  %v294 = vunpack.c.0.s8 %v293
  %v295 = vlaneseq
  %v296 = vshrl.u32 %v295, 7
  %v297 = vsub.s32 %v294, %v296
  %v298 = vrot.slane %v282, %v297
  %v300 = vunpack.c.l.s4 1966171168
  %v301 = vunpack.c.0.s8 %v300
  %v302 = vlaneseq
  %v303 = vshrl.u32 %v302, 7
  %v304 = vsub.s32 %v301, %v303
  %v305 = vrot.slane %v289, %v304
  %v307 = vunpack.c.l.s4 1966171168
  %v308 = vunpack.c.0.s8 %v307
  %v309 = vlaneseq
  %v310 = vshrl.u32 %v309, 7
  %v311 = vsub.s32 %v308, %v310
  %v312 = vrot.slane %v290, %v311
  %v314 = vunpack.c.l.s4 1966171168
  %v315 = vunpack.c.0.s8 %v314
  %v316 = vlaneseq
  %v317 = vshrl.u32 %v316, 7
  %v318 = vsub.s32 %v315, %v317
  %v319 = vrot.slane %v291, %v318
  %v320 = vcombine.high %v298, %v298
  %v321 = vcombine.high %v305, %v305
  %v322 = vcombine.high %v312, %v312
  %v323 = vcombine.high %v319, %v319
  %332 = vst [vmem:[%s5] sm:$0x1] %v298
  %333 = vst [vmem:[%s5 + $0x8] sm:$0x1] %v312
  %334 = vst [vmem:[%s5 + $0x10] sm:$0x1] %v320
  %335 = vst [vmem:[%s5 + $0x18] sm:$0x1] %v322
  %336 = vst [vmem:[%s5 + $0x20] sm:$0x1] %v305
  %337 = vst [vmem:[%s5 + $0x28] sm:$0x1] %v319
  %338 = vst [vmem:[%s5 + $0x30] sm:$0x1] %v321
  %339 = vst [vmem:[%s5 + $0x38] sm:$0x1] %v323
  %s340 = scalar_lea.vmem [#allocation2], 1
  %v341 = vld [vmem:[%s340] ss:$8 sm:$0xf]
  %v342 = vld [vmem:[%s340] ss:$8 sm:$0xf0]
  %v343 = vor.u32 %v341, %v342
  %344 = vmatprep.subr.mxu0 0.0
  %345 = vmatpush1.msra.mxu0 %v172
  %346 = vmatprep.subr.mxu0 0.0
  %347 = vmatpush1.msra.mxu0 %v173
  %348 = vmatprep.subr.mxu0 0.0
  %349 = vmatpush1.msra.mxu0 %v174
  %350 = vmatprep.subr.mxu0 0.0
  %351 = vmatpush1.msra.mxu0 %v175
  %352 = vmatprep.subr.mxu0 0.0
  %353 = vmatpush1.msra.mxu0 %v176
  %354 = vmatprep.subr.mxu0 0.0
  %355 = vmatpush1.msra.mxu0 %v177
  %356 = vmatprep.subr.mxu0 0.0
  %357 = vmatpush1.msra.mxu0 %v178
  %358 = vmatprep.subr.mxu0 0.0
  %359 = vmatpush1.msra.mxu0 %v179
  %360 = vmatprep.subr.mxu0 0.0
  %361 = vmatpush1.msra.mxu0 %v180
  %362 = vmatprep.subr.mxu0 0.0
  %363 = vmatpush1.msra.mxu0 %v181
  %364 = vmatprep.subr.mxu0 0.0
  %365 = vmatpush1.msra.mxu0 %v182
  %366 = vmatprep.subr.mxu0 0.0
  %367 = vmatpush1.msra.mxu0 %v183
  %368 = vmatprep.subr.mxu0 0.0
  %369 = vmatpush1.msra.mxu0 %v184
  %370 = vmatprep.subr.mxu0 0.0
  %371 = vmatpush1.msra.mxu0 %v185
  %372 = vmatprep.subr.mxu0 0.0
  %373 = vmatpush1.msra.mxu0 %v186
  %374 = vmatprep.subr.mxu0 0.0
  %375 = vmatpush1.msra.mxu0 %v187
  %376 = vmatprep.subr.mxu0 0.0
  %377 = vmatpush1.msra.mxu0 0.0
  %378 = vmatprep.subr.mxu0 0.0
  %379 = vmatpush1.msra.mxu0 0.0
  %380 = vmatprep.subr.mxu0 0.0
  %381 = vmatpush1.msra.mxu0 0.0
  %382 = vmatprep.subr.mxu0 0.0
  %383 = vmatpush1.msra.mxu0 0.0
  %384 = vmatprep.subr.mxu0 0.0
  %385 = vmatpush1.msra.mxu0 0.0
  %386 = vmatprep.subr.mxu0 0.0
  %387 = vmatpush1.msra.mxu0 0.0
  %388 = vmatprep.subr.mxu0 0.0
  %389 = vmatpush1.msra.mxu0 0.0
  %390 = vmatprep.subr.mxu0 0.0
  %391 = vmatpush1.msra.mxu0 0.0
  %392 = vmatprep.subr.mxu0 0.0
  %393 = vmatpush1.msra.mxu0 0.0
  %394 = vmatprep.subr.mxu0 0.0
  %395 = vmatpush1.msra.mxu0 0.0
  %396 = vmatprep.subr.mxu0 0.0
  %397 = vmatpush1.msra.mxu0 0.0
  %398 = vmatprep.subr.mxu0 0.0
  %399 = vmatpush1.msra.mxu0 0.0
  %400 = vmatprep.subr.mxu0 0.0
  %401 = vmatpush1.msra.mxu0 0.0
  %402 = vmatprep.subr.mxu0 0.0
  %403 = vmatpush1.msra.mxu0 0.0
  %404 = vmatprep.subr.mxu0 0.0
  %405 = vmatpush1.msra.mxu0 0.0
  %406 = vmatprep.subr.mxu0 0.0
  %407 = vmatpush1.msra.mxu0 0.0
  %408 = vmatprep.mubr.f32.mxu0 0.0
  %409 = vmatmul.mubr.f32.gmra.mrb[0].mxu0 %v272
  %v410 = vpop.f32.mrb[0].mxu0
  %v411 = vadd.f32 0.0, %v410
  %v412 = vpop.f32.mrb[0].mxu0
  %413 = vdwg.mxu0
  %v414 = vadd.f32 %v343, %v411
  %v415 = vtanh.pop %v414
  %s416 = sadd.s32 %s189, 1
  %v417 = vstv %s416
  %vm418 = vcmp.lt.s32.totalorder %v417, %v171
  %v419 = vsel %vm418, 1, 0
  %420 = vset.pattern.permute.xlu0 0
  %421 = vperm.xlu0 %420, %v419
  %v422 = vpop.permute.xlu0 %421
  %vm423 = vcmp.eq.s32.totalorder %v422, 1
  %v424 = vsel %vm423, %v415, %v272
  %v425 = vsel %vm423, %v415, 0.0
  %v427 = vcombine.high %v425, %v425
  %v429 = vunpack.c.l.s4 1966171168
  %v430 = vunpack.c.0.s8 %v429
  %v431 = vlaneseq
  %v432 = vshrl.u32 %v431, 7
  %v433 = vsub.s32 %v430, %v432
  %v434 = vrot.slane %v425, %v433
  %v436 = vunpack.c.l.s4 1966171168
  %v437 = vunpack.c.0.s8 %v436
  %v438 = vlaneseq
  %v439 = vshrl.u32 %v438, 7
  %v440 = vsub.s32 %v437, %v439
  %v441 = vrot.slane %v427, %v440
  %v442 = vcombine.high %v434, %v434
  %v443 = vcombine.high %v441, %v441
  %v445 = vunpack.c.l.s4 1966171168
  %v446 = vunpack.c.0.s8 %v445
  %v447 = vlaneseq
  %v448 = vshrl.u32 %v447, 7
  %v449 = vsub.s32 %v446, %v448
  %v450 = vrot.slane %v434, %v449
  %v452 = vunpack.c.l.s4 1966171168
  %v453 = vunpack.c.0.s8 %v452
  %v454 = vlaneseq
  %v455 = vshrl.u32 %v454, 7
  %v456 = vsub.s32 %v453, %v455
  %v457 = vrot.slane %v441, %v456
  %v459 = vunpack.c.l.s4 1966171168
  %v460 = vunpack.c.0.s8 %v459
  %v461 = vlaneseq
  %v462 = vshrl.u32 %v461, 7
  %v463 = vsub.s32 %v460, %v462
  %v464 = vrot.slane %v442, %v463
  %v466 = vunpack.c.l.s4 1966171168
  %v467 = vunpack.c.0.s8 %v466
  %v468 = vlaneseq
  %v469 = vshrl.u32 %v468, 7
  %v470 = vsub.s32 %v467, %v469
  %v471 = vrot.slane %v443, %v470
  %v472 = vcombine.high %v450, %v450
  %v473 = vcombine.high %v457, %v457
  %v474 = vcombine.high %v464, %v464
  %v475 = vcombine.high %v471, %v471
  %484 = vst [vmem:[%s5 + $0x1] sm:$0x1] %v450
  %485 = vst [vmem:[%s5 + $0x9] sm:$0x1] %v464
  %486 = vst [vmem:[%s5 + $0x11] sm:$0x1] %v472
  %487 = vst [vmem:[%s5 + $0x19] sm:$0x1] %v474
  %488 = vst [vmem:[%s5 + $0x21] sm:$0x1] %v457
  %489 = vst [vmem:[%s5 + $0x29] sm:$0x1] %v471
  %490 = vst [vmem:[%s5 + $0x31] sm:$0x1] %v473
  %491 = vst [vmem:[%s5 + $0x39] sm:$0x1] %v475
  %s492 = scalar_lea.vmem [#allocation2], 2
  %v493 = vld [vmem:[%s492] ss:$8 sm:$0xf]
  %v494 = vld [vmem:[%s492] ss:$8 sm:$0xf0]
  %v495 = vor.u32 %v493, %v494
  %496 = vmatprep.subr.mxu0 0.0
  %497 = vmatpush1.msra.mxu0 %v172
  %498 = vmatprep.subr.mxu0 0.0
  %499 = vmatpush1.msra.mxu0 %v173
  %500 = vmatprep.subr.mxu0 0.0
  %501 = vmatpush1.msra.mxu0 %v174
  %502 = vmatprep.subr.mxu0 0.0
  %503 = vmatpush1.msra.mxu0 %v175
  %504 = vmatprep.subr.mxu0 0.0
  %505 = vmatpush1.msra.mxu0 %v176
  %506 = vmatprep.subr.mxu0 0.0
  %507 = vmatpush1.msra.mxu0 %v177
  %508 = vmatprep.subr.mxu0 0.0
  %509 = vmatpush1.msra.mxu0 %v178
  %510 = vmatprep.subr.mxu0 0.0
  %511 = vmatpush1.msra.mxu0 %v179
  %512 = vmatprep.subr.mxu0 0.0
  %513 = vmatpush1.msra.mxu0 %v180
  %514 = vmatprep.subr.mxu0 0.0
  %515 = vmatpush1.msra.mxu0 %v181
  %516 = vmatprep.subr.mxu0 0.0
  %517 = vmatpush1.msra.mxu0 %v182
  %518 = vmatprep.subr.mxu0 0.0
  %519 = vmatpush1.msra.mxu0 %v183
  %520 = vmatprep.subr.mxu0 0.0
  %521 = vmatpush1.msra.mxu0 %v184
  %522 = vmatprep.subr.mxu0 0.0
  %523 = vmatpush1.msra.mxu0 %v185
  %524 = vmatprep.subr.mxu0 0.0
  %525 = vmatpush1.msra.mxu0 %v186
  %526 = vmatprep.subr.mxu0 0.0
  %527 = vmatpush1.msra.mxu0 %v187
  %528 = vmatprep.subr.mxu0 0.0
  %529 = vmatpush1.msra.mxu0 0.0
  %530 = vmatprep.subr.mxu0 0.0
  %531 = vmatpush1.msra.mxu0 0.0
  %532 = vmatprep.subr.mxu0 0.0
  %533 = vmatpush1.msra.mxu0 0.0
  %534 = vmatprep.subr.mxu0 0.0
  %535 = vmatpush1.msra.mxu0 0.0
  %536 = vmatprep.subr.mxu0 0.0
  %537 = vmatpush1.msra.mxu0 0.0
  %538 = vmatprep.subr.mxu0 0.0
  %539 = vmatpush1.msra.mxu0 0.0
  %540 = vmatprep.subr.mxu0 0.0
  %541 = vmatpush1.msra.mxu0 0.0
  %542 = vmatprep.subr.mxu0 0.0
  %543 = vmatpush1.msra.mxu0 0.0
  %544 = vmatprep.subr.mxu0 0.0
  %545 = vmatpush1.msra.mxu0 0.0
  %546 = vmatprep.subr.mxu0 0.0
  %547 = vmatpush1.msra.mxu0 0.0
  %548 = vmatprep.subr.mxu0 0.0
  %549 = vmatpush1.msra.mxu0 0.0
  %550 = vmatprep.subr.mxu0 0.0
  %551 = vmatpush1.msra.mxu0 0.0
  %552 = vmatprep.subr.mxu0 0.0
  %553 = vmatpush1.msra.mxu0 0.0
  %554 = vmatprep.subr.mxu0 0.0
  %555 = vmatpush1.msra.mxu0 0.0
  %556 = vmatprep.subr.mxu0 0.0
  %557 = vmatpush1.msra.mxu0 0.0
  %558 = vmatprep.subr.mxu0 0.0
  %559 = vmatpush1.msra.mxu0 0.0
  %560 = vmatprep.mubr.f32.mxu0 0.0
  %561 = vmatmul.mubr.f32.gmra.mrb[0].mxu0 %v424
  %v562 = vpop.f32.mrb[0].mxu0
  %v563 = vadd.f32 0.0, %v562
  %v564 = vpop.f32.mrb[0].mxu0
  %565 = vdwg.mxu0
  %v566 = vadd.f32 %v495, %v563
  %v567 = vtanh.pop %v566
  %s568 = sadd.s32 %s189, 2
  %v569 = vstv %s568
  %vm570 = vcmp.lt.s32.totalorder %v569, %v171
  %v571 = vsel %vm570, 1, 0
  %572 = vset.pattern.permute.xlu0 0
  %573 = vperm.xlu0 %572, %v571
  %v574 = vpop.permute.xlu0 %573
  %vm575 = vcmp.eq.s32.totalorder %v574, 1
  %v576 = vsel %vm575, %v567, %v424
  %v577 = vsel %vm575, %v567, 0.0
  %v579 = vcombine.high %v577, %v577
  %v581 = vunpack.c.l.s4 1966171168
  %v582 = vunpack.c.0.s8 %v581
  %v583 = vlaneseq
  %v584 = vshrl.u32 %v583, 7
  %v585 = vsub.s32 %v582, %v584
  %v586 = vrot.slane %v577, %v585
  %v588 = vunpack.c.l.s4 1966171168
  %v589 = vunpack.c.0.s8 %v588
  %v590 = vlaneseq
  %v591 = vshrl.u32 %v590, 7
  %v592 = vsub.s32 %v589, %v591
  %v593 = vrot.slane %v579, %v592
  %v594 = vcombine.high %v586, %v586
  %v595 = vcombine.high %v593, %v593
  %v597 = vunpack.c.l.s4 1966171168
  %v598 = vunpack.c.0.s8 %v597
  %v599 = vlaneseq
  %v600 = vshrl.u32 %v599, 7
  %v601 = vsub.s32 %v598, %v600
  %v602 = vrot.slane %v586, %v601
  %v604 = vunpack.c.l.s4 1966171168
  %v605 = vunpack.c.0.s8 %v604
  %v606 = vlaneseq
  %v607 = vshrl.u32 %v606, 7
  %v608 = vsub.s32 %v605, %v607
  %v609 = vrot.slane %v593, %v608
  %v611 = vunpack.c.l.s4 1966171168
  %v612 = vunpack.c.0.s8 %v611
  %v613 = vlaneseq
  %v614 = vshrl.u32 %v613, 7
  %v615 = vsub.s32 %v612, %v614
  %v616 = vrot.slane %v594, %v615
  %v618 = vunpack.c.l.s4 1966171168
  %v619 = vunpack.c.0.s8 %v618
  %v620 = vlaneseq
  %v621 = vshrl.u32 %v620, 7
  %v622 = vsub.s32 %v619, %v621
  %v623 = vrot.slane %v595, %v622
  %v624 = vcombine.high %v602, %v602
  %v625 = vcombine.high %v609, %v609
  %v626 = vcombine.high %v616, %v616
  %v627 = vcombine.high %v623, %v623
  %636 = vst [vmem:[%s5 + $0x2] sm:$0x1] %v602
  %637 = vst [vmem:[%s5 + $0xa] sm:$0x1] %v616
  %638 = vst [vmem:[%s5 + $0x12] sm:$0x1] %v624
  %639 = vst [vmem:[%s5 + $0x1a] sm:$0x1] %v626
  %640 = vst [vmem:[%s5 + $0x22] sm:$0x1] %v609
  %641 = vst [vmem:[%s5 + $0x2a] sm:$0x1] %v623
  %642 = vst [vmem:[%s5 + $0x32] sm:$0x1] %v625
  %643 = vst [vmem:[%s5 + $0x3a] sm:$0x1] %v627
  %s644 = scalar_lea.vmem [#allocation2], 3
  %v645 = vld [vmem:[%s644] ss:$8 sm:$0xf]
  %v646 = vld [vmem:[%s644] ss:$8 sm:$0xf0]
  %v647 = vor.u32 %v645, %v646
  %648 = vmatprep.subr.mxu0 0.0
  %649 = vmatpush1.msra.mxu0 %v172
  %650 = vmatprep.subr.mxu0 0.0
  %651 = vmatpush1.msra.mxu0 %v173
  %652 = vmatprep.subr.mxu0 0.0
  %653 = vmatpush1.msra.mxu0 %v174
  %654 = vmatprep.subr.mxu0 0.0
  %655 = vmatpush1.msra.mxu0 %v175
  %656 = vmatprep.subr.mxu0 0.0
  %657 = vmatpush1.msra.mxu0 %v176
  %658 = vmatprep.subr.mxu0 0.0
  %659 = vmatpush1.msra.mxu0 %v177
  %660 = vmatprep.subr.mxu0 0.0
  %661 = vmatpush1.msra.mxu0 %v178
  %662 = vmatprep.subr.mxu0 0.0
  %663 = vmatpush1.msra.mxu0 %v179
  %664 = vmatprep.subr.mxu0 0.0
  %665 = vmatpush1.msra.mxu0 %v180
  %666 = vmatprep.subr.mxu0 0.0
  %667 = vmatpush1.msra.mxu0 %v181
  %668 = vmatprep.subr.mxu0 0.0
  %669 = vmatpush1.msra.mxu0 %v182
  %670 = vmatprep.subr.mxu0 0.0
  %671 = vmatpush1.msra.mxu0 %v183
  %672 = vmatprep.subr.mxu0 0.0
  %673 = vmatpush1.msra.mxu0 %v184
  %674 = vmatprep.subr.mxu0 0.0
  %675 = vmatpush1.msra.mxu0 %v185
  %676 = vmatprep.subr.mxu0 0.0
  %677 = vmatpush1.msra.mxu0 %v186
  %678 = vmatprep.subr.mxu0 0.0
  %679 = vmatpush1.msra.mxu0 %v187
  %680 = vmatprep.subr.mxu0 0.0
  %681 = vmatpush1.msra.mxu0 0.0
  %682 = vmatprep.subr.mxu0 0.0
  %683 = vmatpush1.msra.mxu0 0.0
  %684 = vmatprep.subr.mxu0 0.0
  %685 = vmatpush1.msra.mxu0 0.0
  %686 = vmatprep.subr.mxu0 0.0
  %687 = vmatpush1.msra.mxu0 0.0
  %688 = vmatprep.subr.mxu0 0.0
  %689 = vmatpush1.msra.mxu0 0.0
  %690 = vmatprep.subr.mxu0 0.0
  %691 = vmatpush1.msra.mxu0 0.0
  %692 = vmatprep.subr.mxu0 0.0
  %693 = vmatpush1.msra.mxu0 0.0
  %694 = vmatprep.subr.mxu0 0.0
  %695 = vmatpush1.msra.mxu0 0.0
  %696 = vmatprep.subr.mxu0 0.0
  %697 = vmatpush1.msra.mxu0 0.0
  %698 = vmatprep.subr.mxu0 0.0
  %699 = vmatpush1.msra.mxu0 0.0
  %700 = vmatprep.subr.mxu0 0.0
  %701 = vmatpush1.msra.mxu0 0.0
  %702 = vmatprep.subr.mxu0 0.0
  %703 = vmatpush1.msra.mxu0 0.0
  %704 = vmatprep.subr.mxu0 0.0
  %705 = vmatpush1.msra.mxu0 0.0
  %706 = vmatprep.subr.mxu0 0.0
  %707 = vmatpush1.msra.mxu0 0.0
  %708 = vmatprep.subr.mxu0 0.0
  %709 = vmatpush1.msra.mxu0 0.0
  %710 = vmatprep.subr.mxu0 0.0
  %711 = vmatpush1.msra.mxu0 0.0
  %712 = vmatprep.mubr.f32.mxu0 0.0
  %713 = vmatmul.mubr.f32.gmra.mrb[0].mxu0 %v576
  %v714 = vpop.f32.mrb[0].mxu0
  %v715 = vadd.f32 0.0, %v714
  %v716 = vpop.f32.mrb[0].mxu0
  %717 = vdwg.mxu0
  %v718 = vadd.f32 %v647, %v715
  %v719 = vtanh.pop %v718
  %s720 = sadd.s32 %s189, 3
  %v721 = vstv %s720
  %vm722 = vcmp.lt.s32.totalorder %v721, %v171
  %v723 = vsel %vm722, 1, 0
  %724 = vset.pattern.permute.xlu0 0
  %725 = vperm.xlu0 %724, %v723
  %v726 = vpop.permute.xlu0 %725
  %vm727 = vcmp.eq.s32.totalorder %v726, 1
  %v728 = vsel %vm727, %v719, %v576
  %v729 = vsel %vm727, %v719, 0.0
  %v731 = vcombine.high %v729, %v729
  %v733 = vunpack.c.l.s4 1966171168
  %v734 = vunpack.c.0.s8 %v733
  %v735 = vlaneseq
  %v736 = vshrl.u32 %v735, 7
  %v737 = vsub.s32 %v734, %v736
  %v738 = vrot.slane %v729, %v737
  %v740 = vunpack.c.l.s4 1966171168
  %v741 = vunpack.c.0.s8 %v740
  %v742 = vlaneseq
  %v743 = vshrl.u32 %v742, 7
  %v744 = vsub.s32 %v741, %v743
  %v745 = vrot.slane %v731, %v744
  %v746 = vcombine.high %v738, %v738
  %v747 = vcombine.high %v745, %v745
  %v749 = vunpack.c.l.s4 1966171168
  %v750 = vunpack.c.0.s8 %v749
  %v751 = vlaneseq
  %v752 = vshrl.u32 %v751, 7
  %v753 = vsub.s32 %v750, %v752
  %v754 = vrot.slane %v738, %v753
  %v756 = vunpack.c.l.s4 1966171168
  %v757 = vunpack.c.0.s8 %v756
  %v758 = vlaneseq
  %v759 = vshrl.u32 %v758, 7
  %v760 = vsub.s32 %v757, %v759
  %v761 = vrot.slane %v745, %v760
  %v763 = vunpack.c.l.s4 1966171168
  %v764 = vunpack.c.0.s8 %v763
  %v765 = vlaneseq
  %v766 = vshrl.u32 %v765, 7
  %v767 = vsub.s32 %v764, %v766
  %v768 = vrot.slane %v746, %v767
  %v770 = vunpack.c.l.s4 1966171168
  %v771 = vunpack.c.0.s8 %v770
  %v772 = vlaneseq
  %v773 = vshrl.u32 %v772, 7
  %v774 = vsub.s32 %v771, %v773
  %v775 = vrot.slane %v747, %v774
  %v776 = vcombine.high %v754, %v754
  %v777 = vcombine.high %v761, %v761
  %v778 = vcombine.high %v768, %v768
  %v779 = vcombine.high %v775, %v775
  %788 = vst [vmem:[%s5 + $0x3] sm:$0x1] %v754
  %789 = vst [vmem:[%s5 + $0xb] sm:$0x1] %v768
  %790 = vst [vmem:[%s5 + $0x13] sm:$0x1] %v776
  %791 = vst [vmem:[%s5 + $0x1b] sm:$0x1] %v778
  %792 = vst [vmem:[%s5 + $0x23] sm:$0x1] %v761
  %793 = vst [vmem:[%s5 + $0x2b] sm:$0x1] %v775
  %794 = vst [vmem:[%s5 + $0x33] sm:$0x1] %v777
  %795 = vst [vmem:[%s5 + $0x3b] sm:$0x1] %v779
  %s796 = scalar_lea.vmem [#allocation2], 4
  %v797 = vld [vmem:[%s796] ss:$8 sm:$0xf]
  %v798 = vld [vmem:[%s796] ss:$8 sm:$0xf0]
  %v799 = vor.u32 %v797, %v798
  %800 = vmatprep.subr.mxu0 0.0
  %801 = vmatpush1.msra.mxu0 %v172
  %802 = vmatprep.subr.mxu0 0.0
  %803 = vmatpush1.msra.mxu0 %v173
  %804 = vmatprep.subr.mxu0 0.0
  %805 = vmatpush1.msra.mxu0 %v174
  %806 = vmatprep.subr.mxu0 0.0
  %807 = vmatpush1.msra.mxu0 %v175
  %808 = vmatprep.subr.mxu0 0.0
  %809 = vmatpush1.msra.mxu0 %v176
  %810 = vmatprep.subr.mxu0 0.0
  %811 = vmatpush1.msra.mxu0 %v177
  %812 = vmatprep.subr.mxu0 0.0
  %813 = vmatpush1.msra.mxu0 %v178
  %814 = vmatprep.subr.mxu0 0.0
  %815 = vmatpush1.msra.mxu0 %v179
  %816 = vmatprep.subr.mxu0 0.0
  %817 = vmatpush1.msra.mxu0 %v180
  %818 = vmatprep.subr.mxu0 0.0
  %819 = vmatpush1.msra.mxu0 %v181
  %820 = vmatprep.subr.mxu0 0.0
  %821 = vmatpush1.msra.mxu0 %v182
  %822 = vmatprep.subr.mxu0 0.0
  %823 = vmatpush1.msra.mxu0 %v183
  %824 = vmatprep.subr.mxu0 0.0
  %825 = vmatpush1.msra.mxu0 %v184
  %826 = vmatprep.subr.mxu0 0.0
  %827 = vmatpush1.msra.mxu0 %v185
  %828 = vmatprep.subr.mxu0 0.0
  %829 = vmatpush1.msra.mxu0 %v186
  %830 = vmatprep.subr.mxu0 0.0
  %831 = vmatpush1.msra.mxu0 %v187
  %832 = vmatprep.subr.mxu0 0.0
  %833 = vmatpush1.msra.mxu0 0.0
  %834 = vmatprep.subr.mxu0 0.0
  %835 = vmatpush1.msra.mxu0 0.0
  %836 = vmatprep.subr.mxu0 0.0
  %837 = vmatpush1.msra.mxu0 0.0
  %838 = vmatprep.subr.mxu0 0.0
  %839 = vmatpush1.msra.mxu0 0.0
  %840 = vmatprep.subr.mxu0 0.0
  %841 = vmatpush1.msra.mxu0 0.0
  %842 = vmatprep.subr.mxu0 0.0
  %843 = vmatpush1.msra.mxu0 0.0
  %844 = vmatprep.subr.mxu0 0.0
  %845 = vmatpush1.msra.mxu0 0.0
  %846 = vmatprep.subr.mxu0 0.0
  %847 = vmatpush1.msra.mxu0 0.0
  %848 = vmatprep.subr.mxu0 0.0
  %849 = vmatpush1.msra.mxu0 0.0
  %850 = vmatprep.subr.mxu0 0.0
  %851 = vmatpush1.msra.mxu0 0.0
  %852 = vmatprep.subr.mxu0 0.0
  %853 = vmatpush1.msra.mxu0 0.0
  %854 = vmatprep.subr.mxu0 0.0
  %855 = vmatpush1.msra.mxu0 0.0
  %856 = vmatprep.subr.mxu0 0.0
  %857 = vmatpush1.msra.mxu0 0.0
  %858 = vmatprep.subr.mxu0 0.0
  %859 = vmatpush1.msra.mxu0 0.0
  %860 = vmatprep.subr.mxu0 0.0
  %861 = vmatpush1.msra.mxu0 0.0
  %862 = vmatprep.subr.mxu0 0.0
  %863 = vmatpush1.msra.mxu0 0.0
  %864 = vmatprep.mubr.f32.mxu0 0.0
  %865 = vmatmul.mubr.f32.gmra.mrb[0].mxu0 %v728
  %v866 = vpop.f32.mrb[0].mxu0
  %v867 = vadd.f32 0.0, %v866
  %v868 = vpop.f32.mrb[0].mxu0
  %869 = vdwg.mxu0
  %v870 = vadd.f32 %v799, %v867
  %v871 = vtanh.pop %v870
  %s872 = sadd.s32 %s189, 4
  %v873 = vstv %s872
  %vm874 = vcmp.lt.s32.totalorder %v873, %v171
  %v875 = vsel %vm874, 1, 0
  %876 = vset.pattern.permute.xlu0 0
  %877 = vperm.xlu0 %876, %v875
  %v878 = vpop.permute.xlu0 %877
  %vm879 = vcmp.eq.s32.totalorder %v878, 1
  %v880 = vsel %vm879, %v871, %v728
  %v881 = vsel %vm879, %v871, 0.0
  %v883 = vcombine.high %v881, %v881
  %v885 = vunpack.c.l.s4 1966171168
  %v886 = vunpack.c.0.s8 %v885
  %v887 = vlaneseq
  %v888 = vshrl.u32 %v887, 7
  %v889 = vsub.s32 %v886, %v888
  %v890 = vrot.slane %v881, %v889
  %v892 = vunpack.c.l.s4 1966171168
  %v893 = vunpack.c.0.s8 %v892
  %v894 = vlaneseq
  %v895 = vshrl.u32 %v894, 7
  %v896 = vsub.s32 %v893, %v895
  %v897 = vrot.slane %v883, %v896
  %v898 = vcombine.high %v890, %v890
  %v899 = vcombine.high %v897, %v897
  %v901 = vunpack.c.l.s4 1966171168
  %v902 = vunpack.c.0.s8 %v901
  %v903 = vlaneseq
  %v904 = vshrl.u32 %v903, 7
  %v905 = vsub.s32 %v902, %v904
  %v906 = vrot.slane %v890, %v905
  %v908 = vunpack.c.l.s4 1966171168
  %v909 = vunpack.c.0.s8 %v908
  %v910 = vlaneseq
  %v911 = vshrl.u32 %v910, 7
  %v912 = vsub.s32 %v909, %v911
  %v913 = vrot.slane %v897, %v912
  %v915 = vunpack.c.l.s4 1966171168
  %v916 = vunpack.c.0.s8 %v915
  %v917 = vlaneseq
  %v918 = vshrl.u32 %v917, 7
  %v919 = vsub.s32 %v916, %v918
  %v920 = vrot.slane %v898, %v919
  %v922 = vunpack.c.l.s4 1966171168
  %v923 = vunpack.c.0.s8 %v922
  %v924 = vlaneseq
  %v925 = vshrl.u32 %v924, 7
  %v926 = vsub.s32 %v923, %v925
  %v927 = vrot.slane %v899, %v926
  %v928 = vcombine.high %v906, %v906
  %v929 = vcombine.high %v913, %v913
  %v930 = vcombine.high %v920, %v920
  %v931 = vcombine.high %v927, %v927
  %940 = vst [vmem:[%s5 + $0x4] sm:$0x1] %v906
  %941 = vst [vmem:[%s5 + $0xc] sm:$0x1] %v920
  %942 = vst [vmem:[%s5 + $0x14] sm:$0x1] %v928
  %943 = vst [vmem:[%s5 + $0x1c] sm:$0x1] %v930
  %944 = vst [vmem:[%s5 + $0x24] sm:$0x1] %v913
  %945 = vst [vmem:[%s5 + $0x2c] sm:$0x1] %v927
  %946 = vst [vmem:[%s5 + $0x34] sm:$0x1] %v929
  %947 = vst [vmem:[%s5 + $0x3c] sm:$0x1] %v931
  %s948 = scalar_lea.vmem [#allocation2], 5
  %v949 = vld [vmem:[%s948] ss:$8 sm:$0xf]
  %v950 = vld [vmem:[%s948] ss:$8 sm:$0xf0]
  %v951 = vor.u32 %v949, %v950
  %952 = vmatprep.subr.mxu0 0.0
  %953 = vmatpush1.msra.mxu0 %v172
  %954 = vmatprep.subr.mxu0 0.0
  %955 = vmatpush1.msra.mxu0 %v173
  %956 = vmatprep.subr.mxu0 0.0
  %957 = vmatpush1.msra.mxu0 %v174
  %958 = vmatprep.subr.mxu0 0.0
  %959 = vmatpush1.msra.mxu0 %v175
  %960 = vmatprep.subr.mxu0 0.0
  %961 = vmatpush1.msra.mxu0 %v176
  %962 = vmatprep.subr.mxu0 0.0
  %963 = vmatpush1.msra.mxu0 %v177
  %964 = vmatprep.subr.mxu0 0.0
  %965 = vmatpush1.msra.mxu0 %v178
  %966 = vmatprep.subr.mxu0 0.0
  %967 = vmatpush1.msra.mxu0 %v179
  %968 = vmatprep.subr.mxu0 0.0
  %969 = vmatpush1.msra.mxu0 %v180
  %970 = vmatprep.subr.mxu0 0.0
  %971 = vmatpush1.msra.mxu0 %v181
  %972 = vmatprep.subr.mxu0 0.0
  %973 = vmatpush1.msra.mxu0 %v182
  %974 = vmatprep.subr.mxu0 0.0
  %975 = vmatpush1.msra.mxu0 %v183
  %976 = vmatprep.subr.mxu0 0.0
  %977 = vmatpush1.msra.mxu0 %v184
  %978 = vmatprep.subr.mxu0 0.0
  %979 = vmatpush1.msra.mxu0 %v185
  %980 = vmatprep.subr.mxu0 0.0
  %981 = vmatpush1.msra.mxu0 %v186
  %982 = vmatprep.subr.mxu0 0.0
  %983 = vmatpush1.msra.mxu0 %v187
  %984 = vmatprep.subr.mxu0 0.0
  %985 = vmatpush1.msra.mxu0 0.0
  %986 = vmatprep.subr.mxu0 0.0
  %987 = vmatpush1.msra.mxu0 0.0
  %988 = vmatprep.subr.mxu0 0.0
  %989 = vmatpush1.msra.mxu0 0.0
  %990 = vmatprep.subr.mxu0 0.0
  %991 = vmatpush1.msra.mxu0 0.0
  %992 = vmatprep.subr.mxu0 0.0
  %993 = vmatpush1.msra.mxu0 0.0
  %994 = vmatprep.subr.mxu0 0.0
  %995 = vmatpush1.msra.mxu0 0.0
  %996 = vmatprep.subr.mxu0 0.0
  %997 = vmatpush1.msra.mxu0 0.0
  %998 = vmatprep.subr.mxu0 0.0
  %999 = vmatpush1.msra.mxu0 0.0
  %1000 = vmatprep.subr.mxu0 0.0
  %1001 = vmatpush1.msra.mxu0 0.0
  %1002 = vmatprep.subr.mxu0 0.0
  %1003 = vmatpush1.msra.mxu0 0.0
  %1004 = vmatprep.subr.mxu0 0.0
  %1005 = vmatpush1.msra.mxu0 0.0
  %1006 = vmatprep.subr.mxu0 0.0
  %1007 = vmatpush1.msra.mxu0 0.0
  %1008 = vmatprep.subr.mxu0 0.0
  %1009 = vmatpush1.msra.mxu0 0.0
  %1010 = vmatprep.subr.mxu0 0.0
  %1011 = vmatpush1.msra.mxu0 0.0
  %1012 = vmatprep.subr.mxu0 0.0
  %1013 = vmatpush1.msra.mxu0 0.0
  %1014 = vmatprep.subr.mxu0 0.0
  %1015 = vmatpush1.msra.mxu0 0.0
  %1016 = vmatprep.mubr.f32.mxu0 0.0
  %1017 = vmatmul.mubr.f32.gmra.mrb[0].mxu0 %v880
  %v1018 = vpop.f32.mrb[0].mxu0
  %v1019 = vadd.f32 0.0, %v1018
  %v1020 = vpop.f32.mrb[0].mxu0
  %1021 = vdwg.mxu0
  %v1022 = vadd.f32 %v951, %v1019
  %v1023 = vtanh.pop %v1022
  %s1024 = sadd.s32 %s189, 5
  %v1025 = vstv %s1024
  %vm1026 = vcmp.lt.s32.totalorder %v1025, %v171
  %v1027 = vsel %vm1026, 1, 0
  %1028 = vset.pattern.permute.xlu0 0
  %1029 = vperm.xlu0 %1028, %v1027
  %v1030 = vpop.permute.xlu0 %1029
  %vm1031 = vcmp.eq.s32.totalorder %v1030, 1
  %v1032 = vsel %vm1031, %v1023, %v880
  %v1033 = vsel %vm1031, %v1023, 0.0
  %v1035 = vcombine.high %v1033, %v1033
  %v1037 = vunpack.c.l.s4 1966171168
  %v1038 = vunpack.c.0.s8 %v1037
  %v1039 = vlaneseq
  %v1040 = vshrl.u32 %v1039, 7
  %v1041 = vsub.s32 %v1038, %v1040
  %v1042 = vrot.slane %v1033, %v1041
  %v1044 = vunpack.c.l.s4 1966171168
  %v1045 = vunpack.c.0.s8 %v1044
  %v1046 = vlaneseq
  %v1047 = vshrl.u32 %v1046, 7
  %v1048 = vsub.s32 %v1045, %v1047
  %v1049 = vrot.slane %v1035, %v1048
  %v1050 = vcombine.high %v1042, %v1042
  %v1051 = vcombine.high %v1049, %v1049
  %v1053 = vunpack.c.l.s4 1966171168
  %v1054 = vunpack.c.0.s8 %v1053
  %v1055 = vlaneseq
  %v1056 = vshrl.u32 %v1055, 7
  %v1057 = vsub.s32 %v1054, %v1056
  %v1058 = vrot.slane %v1042, %v1057
  %v1060 = vunpack.c.l.s4 1966171168
  %v1061 = vunpack.c.0.s8 %v1060
  %v1062 = vlaneseq
  %v1063 = vshrl.u32 %v1062, 7
  %v1064 = vsub.s32 %v1061, %v1063
  %v1065 = vrot.slane %v1049, %v1064
  %v1067 = vunpack.c.l.s4 1966171168
  %v1068 = vunpack.c.0.s8 %v1067
  %v1069 = vlaneseq
  %v1070 = vshrl.u32 %v1069, 7
  %v1071 = vsub.s32 %v1068, %v1070
  %v1072 = vrot.slane %v1050, %v1071
  %v1074 = vunpack.c.l.s4 1966171168
  %v1075 = vunpack.c.0.s8 %v1074
  %v1076 = vlaneseq
  %v1077 = vshrl.u32 %v1076, 7
  %v1078 = vsub.s32 %v1075, %v1077
  %v1079 = vrot.slane %v1051, %v1078
  %v1080 = vcombine.high %v1058, %v1058
  %v1081 = vcombine.high %v1065, %v1065
  %v1082 = vcombine.high %v1072, %v1072
  %v1083 = vcombine.high %v1079, %v1079
  %1092 = vst [vmem:[%s5 + $0x5] sm:$0x1] %v1058
  %1093 = vst [vmem:[%s5 + $0xd] sm:$0x1] %v1072
  %1094 = vst [vmem:[%s5 + $0x15] sm:$0x1] %v1080
  %1095 = vst [vmem:[%s5 + $0x1d] sm:$0x1] %v1082
  %1096 = vst [vmem:[%s5 + $0x25] sm:$0x1] %v1065
  %1097 = vst [vmem:[%s5 + $0x2d] sm:$0x1] %v1079
  %1098 = vst [vmem:[%s5 + $0x35] sm:$0x1] %v1081
  %1099 = vst [vmem:[%s5 + $0x3d] sm:$0x1] %v1083
  %s1100 = scalar_lea.vmem [#allocation2], 6
  %v1101 = vld [vmem:[%s1100] ss:$8 sm:$0xf]
  %v1102 = vld [vmem:[%s1100] ss:$8 sm:$0xf0]
  %v1103 = vor.u32 %v1101, %v1102
  %1104 = vmatprep.subr.mxu0 0.0
  %1105 = vmatpush1.msra.mxu0 %v172
  %1106 = vmatprep.subr.mxu0 0.0
  %1107 = vmatpush1.msra.mxu0 %v173
  %1108 = vmatprep.subr.mxu0 0.0
  %1109 = vmatpush1.msra.mxu0 %v174
  %1110 = vmatprep.subr.mxu0 0.0
  %1111 = vmatpush1.msra.mxu0 %v175
  %1112 = vmatprep.subr.mxu0 0.0
  %1113 = vmatpush1.msra.mxu0 %v176
  %1114 = vmatprep.subr.mxu0 0.0
  %1115 = vmatpush1.msra.mxu0 %v177
  %1116 = vmatprep.subr.mxu0 0.0
  %1117 = vmatpush1.msra.mxu0 %v178
  %1118 = vmatprep.subr.mxu0 0.0
  %1119 = vmatpush1.msra.mxu0 %v179
  %1120 = vmatprep.subr.mxu0 0.0
  %1121 = vmatpush1.msra.mxu0 %v180
  %1122 = vmatprep.subr.mxu0 0.0
  %1123 = vmatpush1.msra.mxu0 %v181
  %1124 = vmatprep.subr.mxu0 0.0
  %1125 = vmatpush1.msra.mxu0 %v182
  %1126 = vmatprep.subr.mxu0 0.0
  %1127 = vmatpush1.msra.mxu0 %v183
  %1128 = vmatprep.subr.mxu0 0.0
  %1129 = vmatpush1.msra.mxu0 %v184
  %1130 = vmatprep.subr.mxu0 0.0
  %1131 = vmatpush1.msra.mxu0 %v185
  %1132 = vmatprep.subr.mxu0 0.0
  %1133 = vmatpush1.msra.mxu0 %v186
  %1134 = vmatprep.subr.mxu0 0.0
  %1135 = vmatpush1.msra.mxu0 %v187
  %1136 = vmatprep.subr.mxu0 0.0
  %1137 = vmatpush1.msra.mxu0 0.0
  %1138 = vmatprep.subr.mxu0 0.0
  %1139 = vmatpush1.msra.mxu0 0.0
  %1140 = vmatprep.subr.mxu0 0.0
  %1141 = vmatpush1.msra.mxu0 0.0
  %1142 = vmatprep.subr.mxu0 0.0
  %1143 = vmatpush1.msra.mxu0 0.0
  %1144 = vmatprep.subr.mxu0 0.0
  %1145 = vmatpush1.msra.mxu0 0.0
  %1146 = vmatprep.subr.mxu0 0.0
  %1147 = vmatpush1.msra.mxu0 0.0
  %1148 = vmatprep.subr.mxu0 0.0
  %1149 = vmatpush1.msra.mxu0 0.0
  %1150 = vmatprep.subr.mxu0 0.0
  %1151 = vmatpush1.msra.mxu0 0.0
  %1152 = vmatprep.subr.mxu0 0.0
  %1153 = vmatpush1.msra.mxu0 0.0
  %1154 = vmatprep.subr.mxu0 0.0
  %1155 = vmatpush1.msra.mxu0 0.0
  %1156 = vmatprep.subr.mxu0 0.0
  %1157 = vmatpush1.msra.mxu0 0.0
  %1158 = vmatprep.subr.mxu0 0.0
  %1159 = vmatpush1.msra.mxu0 0.0
  %1160 = vmatprep.subr.mxu0 0.0
  %1161 = vmatpush1.msra.mxu0 0.0
  %1162 = vmatprep.subr.mxu0 0.0
  %1163 = vmatpush1.msra.mxu0 0.0
  %1164 = vmatprep.subr.mxu0 0.0
  %1165 = vmatpush1.msra.mxu0 0.0
  %1166 = vmatprep.subr.mxu0 0.0
  %1167 = vmatpush1.msra.mxu0 0.0
  %1168 = vmatprep.mubr.f32.mxu0 0.0
  %1169 = vmatmul.mubr.f32.gmra.mrb[0].mxu0 %v1032
  %v1170 = vpop.f32.mrb[0].mxu0
  %v1171 = vadd.f32 0.0, %v1170
  %v1172 = vpop.f32.mrb[0].mxu0
  %1173 = vdwg.mxu0
  %v1174 = vadd.f32 %v1103, %v1171
  %v1175 = vtanh.pop %v1174
  %s1176 = sadd.s32 %s189, 6
  %v1177 = vstv %s1176
  %vm1178 = vcmp.lt.s32.totalorder %v1177, %v171
  %v1179 = vsel %vm1178, 1, 0
  %1180 = vset.pattern.permute.xlu0 0
  %1181 = vperm.xlu0 %1180, %v1179
  %v1182 = vpop.permute.xlu0 %1181
  %vm1183 = vcmp.eq.s32.totalorder %v1182, 1
  %v1184 = vsel %vm1183, %v1175, %v1032
  %v1185 = vsel %vm1183, %v1175, 0.0
  %v1187 = vcombine.high %v1185, %v1185
  %v1189 = vunpack.c.l.s4 1966171168
  %v1190 = vunpack.c.0.s8 %v1189
  %v1191 = vlaneseq
  %v1192 = vshrl.u32 %v1191, 7
  %v1193 = vsub.s32 %v1190, %v1192
  %v1194 = vrot.slane %v1185, %v1193
  %v1196 = vunpack.c.l.s4 1966171168
  %v1197 = vunpack.c.0.s8 %v1196
  %v1198 = vlaneseq
  %v1199 = vshrl.u32 %v1198, 7
  %v1200 = vsub.s32 %v1197, %v1199
  %v1201 = vrot.slane %v1187, %v1200
  %v1202 = vcombine.high %v1194, %v1194
  %v1203 = vcombine.high %v1201, %v1201
  %v1205 = vunpack.c.l.s4 1966171168
  %v1206 = vunpack.c.0.s8 %v1205
  %v1207 = vlaneseq
  %v1208 = vshrl.u32 %v1207, 7
  %v1209 = vsub.s32 %v1206, %v1208
  %v1210 = vrot.slane %v1194, %v1209
  %v1212 = vunpack.c.l.s4 1966171168
  %v1213 = vunpack.c.0.s8 %v1212
  %v1214 = vlaneseq
  %v1215 = vshrl.u32 %v1214, 7
  %v1216 = vsub.s32 %v1213, %v1215
  %v1217 = vrot.slane %v1201, %v1216
  %v1219 = vunpack.c.l.s4 1966171168
  %v1220 = vunpack.c.0.s8 %v1219
  %v1221 = vlaneseq
  %v1222 = vshrl.u32 %v1221, 7
  %v1223 = vsub.s32 %v1220, %v1222
  %v1224 = vrot.slane %v1202, %v1223
  %v1226 = vunpack.c.l.s4 1966171168
  %v1227 = vunpack.c.0.s8 %v1226
  %v1228 = vlaneseq
  %v1229 = vshrl.u32 %v1228, 7
  %v1230 = vsub.s32 %v1227, %v1229
  %v1231 = vrot.slane %v1203, %v1230
  %v1232 = vcombine.high %v1210, %v1210
  %v1233 = vcombine.high %v1217, %v1217
  %v1234 = vcombine.high %v1224, %v1224
  %v1235 = vcombine.high %v1231, %v1231
  %1244 = vst [vmem:[%s5 + $0x6] sm:$0x1] %v1210
  %1245 = vst [vmem:[%s5 + $0xe] sm:$0x1] %v1224
  %1246 = vst [vmem:[%s5 + $0x16] sm:$0x1] %v1232
  %1247 = vst [vmem:[%s5 + $0x1e] sm:$0x1] %v1234
  %1248 = vst [vmem:[%s5 + $0x26] sm:$0x1] %v1217
  %1249 = vst [vmem:[%s5 + $0x2e] sm:$0x1] %v1231
  %1250 = vst [vmem:[%s5 + $0x36] sm:$0x1] %v1233
  %1251 = vst [vmem:[%s5 + $0x3e] sm:$0x1] %v1235
  %s1252 = scalar_lea.vmem [#allocation2], 7
  %v1253 = vld [vmem:[%s1252] ss:$8 sm:$0xf]
  %v1254 = vld [vmem:[%s1252] ss:$8 sm:$0xf0]
  %v1255 = vor.u32 %v1253, %v1254
  %1256 = vmatprep.subr.mxu0 0.0
  %1257 = vmatpush1.msra.mxu0 %v172
  %1258 = vmatprep.subr.mxu0 0.0
  %1259 = vmatpush1.msra.mxu0 %v173
  %1260 = vmatprep.subr.mxu0 0.0
  %1261 = vmatpush1.msra.mxu0 %v174
  %1262 = vmatprep.subr.mxu0 0.0
  %1263 = vmatpush1.msra.mxu0 %v175
  %1264 = vmatprep.subr.mxu0 0.0
  %1265 = vmatpush1.msra.mxu0 %v176
  %1266 = vmatprep.subr.mxu0 0.0
  %1267 = vmatpush1.msra.mxu0 %v177
  %1268 = vmatprep.subr.mxu0 0.0
  %1269 = vmatpush1.msra.mxu0 %v178
  %1270 = vmatprep.subr.mxu0 0.0
  %1271 = vmatpush1.msra.mxu0 %v179
  %1272 = vmatprep.subr.mxu0 0.0
  %1273 = vmatpush1.msra.mxu0 %v180
  %1274 = vmatprep.subr.mxu0 0.0
  %1275 = vmatpush1.msra.mxu0 %v181
  %1276 = vmatprep.subr.mxu0 0.0
  %1277 = vmatpush1.msra.mxu0 %v182
  %1278 = vmatprep.subr.mxu0 0.0
  %1279 = vmatpush1.msra.mxu0 %v183
  %1280 = vmatprep.subr.mxu0 0.0
  %1281 = vmatpush1.msra.mxu0 %v184
  %1282 = vmatprep.subr.mxu0 0.0
  %1283 = vmatpush1.msra.mxu0 %v185
  %1284 = vmatprep.subr.mxu0 0.0
  %1285 = vmatpush1.msra.mxu0 %v186
  %1286 = vmatprep.subr.mxu0 0.0
  %1287 = vmatpush1.msra.mxu0 %v187
  %1288 = vmatprep.subr.mxu0 0.0
  %1289 = vmatpush1.msra.mxu0 0.0
  %1290 = vmatprep.subr.mxu0 0.0
  %1291 = vmatpush1.msra.mxu0 0.0
  %1292 = vmatprep.subr.mxu0 0.0
  %1293 = vmatpush1.msra.mxu0 0.0
  %1294 = vmatprep.subr.mxu0 0.0
  %1295 = vmatpush1.msra.mxu0 0.0
  %1296 = vmatprep.subr.mxu0 0.0
  %1297 = vmatpush1.msra.mxu0 0.0
  %1298 = vmatprep.subr.mxu0 0.0
  %1299 = vmatpush1.msra.mxu0 0.0
  %1300 = vmatprep.subr.mxu0 0.0
  %1301 = vmatpush1.msra.mxu0 0.0
  %1302 = vmatprep.subr.mxu0 0.0
  %1303 = vmatpush1.msra.mxu0 0.0
  %1304 = vmatprep.subr.mxu0 0.0
  %1305 = vmatpush1.msra.mxu0 0.0
  %1306 = vmatprep.subr.mxu0 0.0
  %1307 = vmatpush1.msra.mxu0 0.0
  %1308 = vmatprep.subr.mxu0 0.0
  %1309 = vmatpush1.msra.mxu0 0.0
  %1310 = vmatprep.subr.mxu0 0.0
  %1311 = vmatpush1.msra.mxu0 0.0
  %1312 = vmatprep.subr.mxu0 0.0
  %1313 = vmatpush1.msra.mxu0 0.0
  %1314 = vmatprep.subr.mxu0 0.0
  %1315 = vmatpush1.msra.mxu0 0.0
  %1316 = vmatprep.subr.mxu0 0.0
  %1317 = vmatpush1.msra.mxu0 0.0
  %1318 = vmatprep.subr.mxu0 0.0
  %1319 = vmatpush1.msra.mxu0 0.0
  %1320 = vmatprep.mubr.f32.mxu0 0.0
  %1321 = vmatmul.mubr.f32.gmra.mrb[0].mxu0 %v1184
  %v1322 = vpop.f32.mrb[0].mxu0
  %v1323 = vadd.f32 0.0, %v1322
  %v1324 = vpop.f32.mrb[0].mxu0
  %1325 = vdwg.mxu0
  %v1326 = vadd.f32 %v1255, %v1323
  %v1327 = vtanh.pop %v1326
  %s1328 = sadd.s32 %s189, 7
  %v1329 = vstv %s1328
  %vm1330 = vcmp.lt.s32.totalorder %v1329, %v171
  %v1331 = vsel %vm1330, 1, 0
  %1332 = vset.pattern.permute.xlu0 0
  %1333 = vperm.xlu0 %1332, %v1331
  %v1334 = vpop.permute.xlu0 %1333
  %vm1335 = vcmp.eq.s32.totalorder %v1334, 1
  %v1336 = vsel %vm1335, %v1327, %v1184
  %v1337 = vsel %vm1335, %v1327, 0.0
  %v1339 = vcombine.high %v1337, %v1337
  %v1341 = vunpack.c.l.s4 1966171168
  %v1342 = vunpack.c.0.s8 %v1341
  %v1343 = vlaneseq
  %v1344 = vshrl.u32 %v1343, 7
  %v1345 = vsub.s32 %v1342, %v1344
  %v1346 = vrot.slane %v1337, %v1345
  %v1348 = vunpack.c.l.s4 1966171168
  %v1349 = vunpack.c.0.s8 %v1348
  %v1350 = vlaneseq
  %v1351 = vshrl.u32 %v1350, 7
  %v1352 = vsub.s32 %v1349, %v1351
  %v1353 = vrot.slane %v1339, %v1352
  %v1354 = vcombine.high %v1346, %v1346
  %v1355 = vcombine.high %v1353, %v1353
  %v1357 = vunpack.c.l.s4 1966171168
  %v1358 = vunpack.c.0.s8 %v1357
  %v1359 = vlaneseq
  %v1360 = vshrl.u32 %v1359, 7
  %v1361 = vsub.s32 %v1358, %v1360
  %v1362 = vrot.slane %v1346, %v1361
  %v1364 = vunpack.c.l.s4 1966171168
  %v1365 = vunpack.c.0.s8 %v1364
  %v1366 = vlaneseq
  %v1367 = vshrl.u32 %v1366, 7
  %v1368 = vsub.s32 %v1365, %v1367
  %v1369 = vrot.slane %v1353, %v1368
  %v1371 = vunpack.c.l.s4 1966171168
  %v1372 = vunpack.c.0.s8 %v1371
  %v1373 = vlaneseq
  %v1374 = vshrl.u32 %v1373, 7
  %v1375 = vsub.s32 %v1372, %v1374
  %v1376 = vrot.slane %v1354, %v1375
  %v1378 = vunpack.c.l.s4 1966171168
  %v1379 = vunpack.c.0.s8 %v1378
  %v1380 = vlaneseq
  %v1381 = vshrl.u32 %v1380, 7
  %v1382 = vsub.s32 %v1379, %v1381
  %v1383 = vrot.slane %v1355, %v1382
  %v1384 = vcombine.high %v1362, %v1362
  %v1385 = vcombine.high %v1369, %v1369
  %v1386 = vcombine.high %v1376, %v1376
  %v1387 = vcombine.high %v1383, %v1383
  %1396 = vst [vmem:[%s5 + $0x7] sm:$0x1] %v1362
  %1397 = vst [vmem:[%s5 + $0xf] sm:$0x1] %v1376
  %1398 = vst [vmem:[%s5 + $0x17] sm:$0x1] %v1384
  %1399 = vst [vmem:[%s5 + $0x1f] sm:$0x1] %v1386
  %1400 = vst [vmem:[%s5 + $0x27] sm:$0x1] %v1369
  %1401 = vst [vmem:[%s5 + $0x2f] sm:$0x1] %v1383
  %1402 = vst [vmem:[%s5 + $0x37] sm:$0x1] %v1385
  %1403 = vst [vmem:[%s5 + $0x3f] sm:$0x1] %v1387
  %1404 = vst [vmem:[#allocation3] sm:$0xff] %v1336
  // Predicated region
  $region26: #{rnn_wrapper_forward.1} parent=0 // pred_check
    %p1405 = pneg %p22
  $region27: #{rnn_wrapper_forward.1} parent=0 // pred_check_branch
    %1407 = sbr.rel (%p1405) target = $region29
  $region28: #{rnn_wrapper_forward.1} parent=0 // pred_region
    %1408 = vst [vmem:[%s6] sm:$0xff] %v1336
  $region29: #{rnn_wrapper_forward.1} parent=0 // pred_fallthru
    _
  // Predicated region
  $region30: #{rnn_wrapper_forward.1} parent=0 // pred_check
    _
  $region31: #{rnn_wrapper_forward.1} parent=0 // pred_check_branch
    %1410 = sbr.rel (0) target = $region33
  $region32: #{rnn_wrapper_forward.1} parent=0 // pred_region
    _
  $region33: #{rnn_wrapper_forward.1} parent=0 // pred_fallthru
    _
  // Predicated region
  $region34: #{rnn_wrapper_forward.1} parent=0 // pred_check
    _
  $region35: #{rnn_wrapper_forward.1} parent=0 // pred_check_branch
    %1412 = sbr.rel (0) target = $region37
  $region36: #{rnn_wrapper_forward.1} parent=0 // pred_region
    _
  $region37: #{rnn_wrapper_forward.1} parent=0 // pred_fallthru
    _
  // Predicated region
  $region38: #{rnn_wrapper_forward.1} parent=0 // pred_check
    _
  $region39: #{rnn_wrapper_forward.1} parent=0 // pred_check_branch
    %1414 = sbr.rel (0) target = $region41
  $region40: #{rnn_wrapper_forward.1} parent=0 // pred_region
    _
  $region41: #{rnn_wrapper_forward.1} parent=0 // pred_fallthru
    _
  // Predicated region
  $region42: #{rnn_wrapper_forward.1} parent=0 // pred_check
    _
  $region43: #{rnn_wrapper_forward.1} parent=0 // pred_check_branch
    %1416 = sbr.rel (0) target = $region45
  $region44: #{rnn_wrapper_forward.1} parent=0 // pred_region
    _
  $region45: #{rnn_wrapper_forward.1} parent=0 // pred_fallthru
    _

</llo_original>
